<compile_context>
chip_gen: v5e
topology: v5e:2x2
jax: 0.10.0
libtpu: 0.0.40
codegen_flags: <defaults>
</compile_context>

<pallas_src>
import functools

import jax
import jax.numpy as jnp
from jax.experimental import pallas as pl
from jax.experimental.pallas import tpu as pltpu

LANE = 128                      # pad internal channel dims to this (lane-dense stores)
VMEM_LIMIT = 32 * 1024 * 1024   # safe on v5e/v6e (128 MiB) and v7x (64 MiB) physical


# ----------------------------------------------------------------------------
# small helpers
# ----------------------------------------------------------------------------
def _silu(x):
    # x * sigmoid(x); the divide goes to the EUP via approximate reciprocal.
    return x * pl.reciprocal(1.0 + jnp.exp(-x), approx=True)


def _apply_act(x, act):
    return _silu(x) if act == "silu" else x


def _row_tile(m, cap=1024):
    # Full extent is always a legal block; otherwise an 8-aligned cap.
    return m if m <= cap else cap


def _pad_dim(x, axis, n):
    pad = n - x.shape[axis]
    if pad <= 0:
        return x
    cfg = [(0, 0)] * x.ndim
    cfg[axis] = (0, pad)
    return jnp.pad(x, cfg)


# ----------------------------------------------------------------------------
# Kernel 1: tiled matmul + bias + activation (1x1 convs / stem im2col matmul)
# ----------------------------------------------------------------------------
def matmul_bias_act_kernel(a_ref, b_ref, bias_ref, o_ref, *, act):
    acc = jnp.dot(a_ref[...], b_ref[...], preferred_element_type=jnp.float32)
    acc = acc + bias_ref[...]
    o_ref[...] = _apply_act(acc, act).astype(o_ref.dtype)


def matmul_bias_act(a, b, bias, act="linear", out_dtype=jnp.bfloat16):
    M, K = a.shape
    K2, N = b.shape
    assert K == K2
    tm = _row_tile(M)
    kernel = functools.partial(matmul_bias_act_kernel, act=act)
    return pl.pallas_call(
        kernel,
        out_shape=jax.ShapeDtypeStruct((M, N), out_dtype),
        grid=(pl.cdiv(M, tm),),
        in_specs=[
            pl.BlockSpec((tm, K), lambda i: (i, 0)),
            pl.BlockSpec((K, N), lambda i: (0, 0)),
            pl.BlockSpec((1, N), lambda i: (0, 0)),
        ],
        out_specs=pl.BlockSpec((tm, N), lambda i: (i, 0)),
        compiler_params=pltpu.CompilerParams(
            dimension_semantics=("parallel",),
            vmem_limit_bytes=VMEM_LIMIT),
    )(a.astype(jnp.bfloat16), b.astype(jnp.bfloat16),
      bias.reshape(1, N).astype(jnp.float32))


# ----------------------------------------------------------------------------
# Kernel 2: depthwise 3x3 (stride 1) + bias + SiLU, fused per-sample spatial
#           sum (feeds the SE branch without an extra activation round-trip).
#           Input is zero-padded (halo) on H and W on the host; taps are
#           static value slices inside the kernel.
# ----------------------------------------------------------------------------
def dwconv_se_pool_kernel(x_ref, w_ref, b_ref, o_ref, sum_ref, *, H, W):
    C = x_ref.shape[-1]
    x = x_ref[0].astype(jnp.float32)                       # (H+2, W+2, C)
    w = w_ref[...].astype(jnp.float32)                     # (3, 3, C)
    acc = jnp.zeros((H, W, C), jnp.float32)
    for kh in range(3):
        for kw in range(3):
            tap = x[kh:kh + H, kw:kw + W, :]               # static slice
            acc = acc + tap * w[kh, kw][None, None, :]
    y = acc + b_ref[...][None, :, :]                       # (H, W, C) + (1, 1, C)
    y = _silu(y)
    o_ref[0] = y.astype(o_ref.dtype)
    # per-sample channel sum for Squeeze-Excite (two single-axis reduces)
    sum_ref[0] = jnp.sum(jnp.sum(y, axis=0), axis=0)[None, :]


def dwconv_se_pool(x_pad, w, bias, H, W):
    # x_pad: (Nb, H+2, W+2, C) bf16 (H and W zero-padded on host).
    # TODO(synk): for large images, tile H with in-kernel halo DMA instead of
    #             whole-sample blocks.
    Nb, Hp, Wp, C = x_pad.shape
    kernel = functools.partial(dwconv_se_pool_kernel, H=H, W=W)
    out, sums = pl.pallas_call(
        kernel,
        out_shape=(jax.ShapeDtypeStruct((Nb, H, W, C), jnp.bfloat16),
                   jax.ShapeDtypeStruct((Nb, 1, C), jnp.float32)),
        grid=(Nb,),
        in_specs=[
            pl.BlockSpec((1, Hp, Wp, C), lambda b: (b, 0, 0, 0)),
            pl.BlockSpec((3, 3, C), lambda b: (0, 0, 0)),
            pl.BlockSpec((1, C), lambda b: (0, 0)),
        ],
        out_specs=(pl.BlockSpec((1, H, W, C), lambda b: (b, 0, 0, 0)),
                   pl.BlockSpec((1, 1, C), lambda b: (b, 0, 0))),
        compiler_params=pltpu.CompilerParams(
            dimension_semantics=("parallel",),
            vmem_limit_bytes=VMEM_LIMIT),
    )(x_pad, w.astype(jnp.float32), bias.reshape(1, C).astype(jnp.float32))
    return out.reshape(Nb, H * W, C), sums


# ----------------------------------------------------------------------------
# Kernel 3: project 1x1 conv fused with SE channel-scale and residual add
#           out = (h * gate) @ W + b + block_in
# ----------------------------------------------------------------------------
def project_kernel(h_ref, g_ref, w_ref, b_ref, r_ref, o_ref):
    x = h_ref[0].astype(jnp.float32) * g_ref[0]            # SE scale
    acc = jnp.dot(x.astype(jnp.bfloat16), w_ref[...],
                  preferred_element_type=jnp.float32)
    acc = acc + b_ref[...] + r_ref[0].astype(jnp.float32)  # bias + residual
    o_ref[0] = acc.astype(o_ref.dtype)


def project_se_residual(h, gate, w, bias, res):
    Nb, HW, CE = h.shape
    CS = w.shape[1]
    t = _row_tile(HW, cap=512)
    return pl.pallas_call(
        project_kernel,
        out_shape=jax.ShapeDtypeStruct((Nb, HW, CS), jnp.bfloat16),
        grid=(Nb, pl.cdiv(HW, t)),
        in_specs=[
            pl.BlockSpec((1, t, CE), lambda b, i: (b, i, 0)),
            pl.BlockSpec((1, 1, CE), lambda b, i: (b, 0, 0)),
            pl.BlockSpec((CE, CS), lambda b, i: (0, 0)),
            pl.BlockSpec((1, CS), lambda b, i: (0, 0)),
            pl.BlockSpec((1, t, CS), lambda b, i: (b, i, 0)),
        ],
        out_specs=pl.BlockSpec((1, t, CS), lambda b, i: (b, i, 0)),
        compiler_params=pltpu.CompilerParams(
            dimension_semantics=("parallel", "parallel"),
            vmem_limit_bytes=VMEM_LIMIT),
    )(h, gate.astype(jnp.float32), w.astype(jnp.bfloat16),
      bias.reshape(1, CS).astype(jnp.float32), res)


# ----------------------------------------------------------------------------
# Kernel 4: head 1x1 conv + SiLU fused with global average pool
#           (accumulated across spatial tiles; finalized on the last step)
# ----------------------------------------------------------------------------
def head_pool_kernel(x_ref, w_ref, b_ref, o_ref, acc_ref, *, hw_total, thw):
    t = pl.program_id(1)

    @pl.when(t == 0)
    def _():
        acc_ref[...] = jnp.zeros_like(acc_ref)

    y = jnp.dot(x_ref[0], w_ref[...], preferred_element_type=jnp.float32)
    y = _silu(y + b_ref[...])
    row = jax.lax.broadcasted_iota(jnp.int32, y.shape, 0) + t * thw
    y = jnp.where(row < hw_total, y, 0.0)                  # mask partial tile
    acc_ref[...] += jnp.sum(y, axis=0, keepdims=True)

    @pl.when(t == pl.num_programs(1) - 1)
    def _():
        o_ref[0] = (acc_ref[...] * (1.0 / hw_total)).astype(o_ref.dtype)


def head_conv_pool(h, w, bias, hw_total):
    Nb, HW, CS = h.shape
    CH = w.shape[1]
    thw = _row_tile(HW, cap=512)
    kernel = functools.partial(head_pool_kernel, hw_total=hw_total, thw=thw)
    return pl.pallas_call(
        kernel,
        out_shape=jax.ShapeDtypeStruct((Nb, 1, CH), jnp.float32),
        grid=(Nb, pl.cdiv(HW, thw)),
        in_specs=[
            pl.BlockSpec((1, thw, CS), lambda b, i: (b, i, 0)),
            pl.BlockSpec((CS, CH), lambda b, i: (0, 0)),
            pl.BlockSpec((1, CH), lambda b, i: (0, 0)),
        ],
        out_specs=pl.BlockSpec((1, 1, CH), lambda b, i: (b, 0, 0)),
        scratch_shapes=[pltpu.VMEM((1, CH), jnp.float32)],
        compiler_params=pltpu.CompilerParams(
            dimension_semantics=("parallel", "arbitrary"),
            vmem_limit_bytes=VMEM_LIMIT),
    )(h, w.astype(jnp.bfloat16), bias.reshape(1, CH).astype(jnp.float32))


# ----------------------------------------------------------------------------
# Glue: im2col, BatchNorm folding, parameter init
# ----------------------------------------------------------------------------
def im2col(x_nhwc, kh, kw, stride, pad):
    # TODO(synk): stem still uses host-side im2col fed through the tiled
    #             matmul; a halo-tiled direct-conv kernel would cut its HBM
    #             read traffic ~9x at real retinopathy resolutions.
    x = jnp.pad(x_nhwc, ((0, 0), (pad, pad), (pad, pad), (0, 0)))
    Nb, H, W, C = x.shape
    Ho = (H - kh) // stride + 1
    Wo = (W - kw) // stride + 1
    cols = []
    for i in range(kh):
        for j in range(kw):
            cols.append(x[:, i:i + stride * Ho:stride, j:j + stride * Wo:stride, :])
    patches = jnp.stack(cols, axis=-2)                      # (N, Ho, Wo, kh*kw, C)
    return patches.reshape(Nb * Ho * Wo, kh * kw * C), (Nb, Ho, Wo)


def fold_bn(gamma, beta, mean, var, eps=1e-5):
    scale = gamma / jnp.sqrt(var + eps)
    shift = beta - mean * scale
    return scale, shift


def conv_w_to_mat(w_oihw):
    # PyTorch conv weight (Cout, Cin, kh, kw) -> (kh*kw*Cin, Cout)
    Cout, Cin, kh, kw = w_oihw.shape
    return jnp.transpose(w_oihw, (2, 3, 1, 0)).reshape(kh * kw * Cin, Cout)


def init_params(key):
    ks = list(jax.random.split(key, 32))
    p = {}

    def nrm(shape, i, s=0.1):
        return jax.random.normal(ks[i], shape, jnp.float32) * s

    def bn(cout, i):
        g = 1.0 + 0.1 * jax.random.normal(ks[i], (cout,), jnp.float32)
        b = 0.1 * jax.random.normal(ks[i], (cout,), jnp.float32)
        m = 0.05 * jax.random.normal(ks[i], (cout,), jnp.float32)
        v = 1.0 + 0.1 * jnp.abs(jax.random.normal(ks[i], (cout,), jnp.float32))
        return g, b, m, v

    C_IN, C_STEM, C_EXP, C_SE, C_HEAD, N_CLS = 3, 16, 64, 4, 64, 5
    p["stem_w"] = nrm((C_STEM, C_IN, 3, 3), 0)
    p["stem_bn"] = bn(C_STEM, 1)
    p["exp_w"] = nrm((C_EXP, C_STEM, 1, 1), 2)
    p["exp_bn"] = bn(C_EXP, 3)
    p["dw_w"] = nrm((C_EXP, 1, 3, 3), 4)
    p["dw_bn"] = bn(C_EXP, 5)
    p["se_fc1_w"] = nrm((C_SE, C_EXP, 1, 1), 6)
    p["se_fc1_b"] = nrm((C_SE,), 7)
    p["se_fc2_w"] = nrm((C_EXP, C_SE, 1, 1), 8)
    p["se_fc2_b"] = nrm((C_EXP,), 9)
    p["proj_w"] = nrm((C_STEM, C_EXP, 1, 1), 10)
    p["proj_bn"] = bn(C_STEM, 11)
    p["head_w"] = nrm((C_HEAD, C_STEM, 1, 1), 12)
    p["head_bn"] = bn(C_HEAD, 13)
    p["cls_w"] = nrm((N_CLS, C_HEAD), 14)   # nn.Linear(in=C_HEAD, out=num_classes)
    p["cls_b"] = nrm((N_CLS,), 15)
    return p


# ----------------------------------------------------------------------------
# Forward pass
# ----------------------------------------------------------------------------
def diabetic_efficientnet_forward(x_nchw, p):
    C_EXP = p["exp_w"].shape[0]
    C_HEAD = p["head_w"].shape[0]
    CSp = CEp = CHp = LANE                      # lane-dense padded channel widths

    x = jnp.transpose(x_nchw, (0, 2, 3, 1)).astype(jnp.float32)   # NCHW -> NHWC

    # --- stem: conv3x3 s2 p1 + folded BN + SiLU (im2col + tiled bf16 MXU) ---
    s, b = fold_bn(*p["stem_bn"])
    w_mat = _pad_dim(conv_w_to_mat(p["stem_w"]) * s[None, :], 1, CSp)
    b_p = _pad_dim(b[None, :], 1, CSp)
    patches, (Nb, Ho, Wo) = im2col(x, 3, 3, stride=2, pad=1)
    HW = Ho * Wo
    h = matmul_bias_act(patches, w_mat, b_p, act="silu")          # (M, 128) bf16
    block_in = h.reshape(Nb, HW, CSp)                             # residual source

    # --- MBConv: expand 1x1 + BN + SiLU ---
    s, b = fold_bn(*p["exp_bn"])
    w_mat = _pad_dim(_pad_dim(conv_w_to_mat(p["exp_w"]) * s[None, :], 0, CSp), 1, CEp)
    b_p = _pad_dim(b[None, :], 1, CEp)
    h = matmul_bias_act(h, w_mat, b_p, act="silu")                # (M, 128) bf16

    # --- depthwise 3x3 + BN + SiLU, fused SE spatial pooling ---
    s, b = fold_bn(*p["dw_bn"])
    dw_w = _pad_dim(jnp.transpose(p["dw_w"][:, 0, :, :], (1, 2, 0)) * s[None, None, :], 2, CEp)
    dw_b = _pad_dim(b[None, :], 1, CEp)
    h4 = h.reshape(Nb, Ho, Wo, CEp)
    h4 = jnp.pad(h4, ((0, 0), (1, 1), (1, 1), (0, 0)))            # H and W halos
    h_dw, dw_sum = dwconv_se_pool(h4, dw_w, dw_b, Ho, Wo)         # (Nb,HW,128), (Nb,1,128)

    # --- Squeeze-Excite MLP (tiny: left to XLA) ---
    pooled = dw_sum[:, 0, :C_EXP] / float(HW)                     # (Nb, C_EXP) f32
    se = jax.nn.silu(pooled @ conv_w_to_mat(p["se_fc1_w"]) + p["se_fc1_b"])
    gate = jax.nn.sigmoid(se @ conv_w_to_mat(p["se_fc2_w"]) + p["se_fc2_b"])
    gate = _pad_dim(gate, 1, CEp)[:, None, :]                     # (Nb, 1, 128)

    # --- project 1x1 + BN, fused SE scale + residual add (eval: no drop-path) ---
    s, b = fold_bn(*p["proj_bn"])
    w_mat = _pad_dim(_pad_dim(conv_w_to_mat(p["proj_w"]) * s[None, :], 0, CEp), 1, CSp)
    b_p = _pad_dim(b[None, :], 1, CSp)
    h = project_se_residual(h_dw, gate, w_mat, b_p, block_in)     # (Nb, HW, 128) bf16

    # --- head 1x1 + BN + SiLU, fused global average pool ---
    s, b = fold_bn(*p["head_bn"])
    w_mat = _pad_dim(_pad_dim(conv_w_to_mat(p["head_w"]) * s[None, :], 0, CSp), 1, CHp)
    b_p = _pad_dim(b[None, :], 1, CHp)
    pooled_head = head_conv_pool(h, w_mat, b_p, HW)               # (Nb, 1, 128) f32

    # --- dropout(eval=identity) + Linear classifier (tiny: left to XLA) ---
    feats = pooled_head[:, 0, :C_HEAD]                            # (Nb, C_HEAD) f32
    logits = feats @ p["cls_w"].T + p["cls_b"]
    return logits                                                 # (Nb, num_classes)


if __name__ == "__main__":
    key = jax.random.PRNGKey(0)
    k_param, k_x = jax.random.split(key)
    params = init_params(k_param)
    x = jax.random.normal(k_x, (2, 3, 16, 16), jnp.float32)       # NCHW like PyTorch
    fwd = jax.jit(diabetic_efficientnet_forward)
    out = fwd(x, params)
    out = jax.block_until_ready(out)
    assert out.shape == (2, 5) and out.dtype == jnp.float32
    print("KERNEL_OK")
</pallas_src>

<mosaic_0001>
module attributes {stable_mosaic.version = 11 : i64} {
  func.func @matmul_bias_act_kernel(%arg0: i32, %arg1: memref<128x128xbf16, #tpu.memory_space<vmem>>, %arg2: memref<128x128xbf16, #tpu.memory_space<vmem>>, %arg3: memref<1x128xf32, #tpu.memory_space<vmem>>, %arg4: memref<128x128xbf16, #tpu.memory_space<vmem>>) attributes {dimension_semantics = [#tpu.dimension_semantics<parallel>], iteration_bounds = array<i64: 1>, scalar_prefetch = 0 : i64, scratch_operands = 0 : i64, tpu.core_type = #tpu.core_type<tc>, window_params = [{transform_indices = @transform_0, window_bounds = array<i64: 128, 128>}, {pipeline_mode = #tpu.pipeline_mode<synchronous>, transform_indices = @transform_1, window_bounds = array<i64: 128, 128>}, {pipeline_mode = #tpu.pipeline_mode<synchronous>, transform_indices = @transform_2, window_bounds = array<i64: 1, 128>}, {transform_indices = @transform_3, window_bounds = array<i64: 128, 128>}]} {
    %c0 = arith.constant 0 : index
    %c0_0 = arith.constant 0 : index
    %0 = vector.load %arg1[%c0, %c0_0] : memref<128x128xbf16, #tpu.memory_space<vmem>>, vector<128x128xbf16>
    %c0_1 = arith.constant 0 : index
    %c0_2 = arith.constant 0 : index
    %1 = vector.load %arg2[%c0_1, %c0_2] : memref<128x128xbf16, #tpu.memory_space<vmem>>, vector<128x128xbf16>
    %cst = arith.constant dense<0.000000e+00> : vector<128x128xf32>
    %2 = tpu.matmul %0, %1, %cst {dimension_numbers = #tpu.dot_dimension_numbers<[1], [0], [0], [1], [0, 0, 1, 1], [], []>} : vector<128x128xbf16>, vector<128x128xbf16>, vector<128x128xf32> -> vector<128x128xf32>
    %c0_3 = arith.constant 0 : index
    %c0_4 = arith.constant 0 : index
    %3 = vector.load %arg3[%c0_3, %c0_4] : memref<1x128xf32, #tpu.memory_space<vmem>>, vector<1x128xf32>
    %4 = vector.broadcast %3 : vector<1x128xf32> to vector<128x128xf32>
    %5 = arith.addf %2, %4 : vector<128x128xf32>
    %cst_5 = arith.constant 0.000000e+00 : f32
    %6 = vector.broadcast %cst_5 : f32 to vector<128x128xf32>
    %7 = arith.subf %6, %5 : vector<128x128xf32>
    %8 = math.exp %7 : vector<128x128xf32>
    %cst_6 = arith.constant 1.000000e+00 : f32
    %9 = vector.broadcast %cst_6 : f32 to vector<128x128xf32>
    %10 = arith.addf %9, %8 : vector<128x128xf32>
    %11 = tpu.reciprocal %10 {approx = true} : vector<128x128xf32> -> vector<128x128xf32>
    %12 = arith.mulf %5, %11 : vector<128x128xf32>
    %13 = arith.truncf %12 : vector<128x128xf32> to vector<128x128xbf16>
    %c0_7 = arith.constant 0 : index
    %c0_8 = arith.constant 0 : index
    %14 = vector.load %arg4[%c0_7, %c0_8] : memref<128x128xbf16, #tpu.memory_space<vmem>>, vector<128x128xbf16>
    tpu.vector_store %arg4[%c0_7, %c0_8], %13 {strides = array<i32>} : memref<128x128xbf16, #tpu.memory_space<vmem>>, vector<128x128xbf16>,
    return
  }
  func.func @transform_0(%arg0: i32) -> (i32, i32) {
    %c0_i32 = arith.constant 0 : i32
    %c0_i32_0 = arith.constant 0 : i32
    return %arg0, %c0_i32 : i32, i32
  }
  func.func @transform_1(%arg0: i32) -> (i32, i32) {
    %c0_i32 = arith.constant 0 : i32
    %c0_i32_0 = arith.constant 0 : i32
    %c0_i32_1 = arith.constant 0 : i32
    return %c0_i32, %c0_i32_0 : i32, i32
  }
  func.func @transform_2(%arg0: i32) -> (i32, i32) {
    %c0_i32 = arith.constant 0 : i32
    %c0_i32_0 = arith.constant 0 : i32
    %c0_i32_1 = arith.constant 0 : i32
    return %c0_i32, %c0_i32_0 : i32, i32
  }
  func.func @transform_3(%arg0: i32) -> (i32, i32) {
    %c0_i32 = arith.constant 0 : i32
    %c0_i32_0 = arith.constant 0 : i32
    return %arg0, %c0_i32 : i32, i32
  }
}

module attributes {stable_mosaic.version = 11 : i64} {
  func.func @matmul_bias_act_kernel(%arg0: i32, %arg1: memref<128x27xbf16, #tpu.memory_space<vmem>>, %arg2: memref<27x128xbf16, #tpu.memory_space<vmem>>, %arg3: memref<1x128xf32, #tpu.memory_space<vmem>>, %arg4: memref<128x128xbf16, #tpu.memory_space<vmem>>) attributes {dimension_semantics = [#tpu.dimension_semantics<parallel>], iteration_bounds = array<i64: 1>, scalar_prefetch = 0 : i64, scratch_operands = 0 : i64, tpu.core_type = #tpu.core_type<tc>, window_params = [{transform_indices = @transform_0, window_bounds = array<i64: 128, 27>}, {pipeline_mode = #tpu.pipeline_mode<synchronous>, transform_indices = @transform_1, window_bounds = array<i64: 27, 128>}, {pipeline_mode = #tpu.pipeline_mode<synchronous>, transform_indices = @transform_2, window_bounds = array<i64: 1, 128>}, {transform_indices = @transform_3, window_bounds = array<i64: 128, 128>}]} {
    %c0 = arith.constant 0 : index
    %c0_0 = arith.constant 0 : index
    %0 = vector.load %arg1[%c0, %c0_0] : memref<128x27xbf16, #tpu.memory_space<vmem>>, vector<128x27xbf16>
    %c0_1 = arith.constant 0 : index
    %c0_2 = arith.constant 0 : index
    %1 = vector.load %arg2[%c0_1, %c0_2] : memref<27x128xbf16, #tpu.memory_space<vmem>>, vector<27x128xbf16>
    %cst = arith.constant dense<0.000000e+00> : vector<128x128xf32>
    %2 = tpu.matmul %0, %1, %cst {dimension_numbers = #tpu.dot_dimension_numbers<[1], [0], [0], [1], [0, 0, 1, 1], [], []>} : vector<128x27xbf16>, vector<27x128xbf16>, vector<128x128xf32> -> vector<128x128xf32>
    %c0_3 = arith.constant 0 : index
    %c0_4 = arith.constant 0 : index
    %3 = vector.load %arg3[%c0_3, %c0_4] : memref<1x128xf32, #tpu.memory_space<vmem>>, vector<1x128xf32>
    %4 = vector.broadcast %3 : vector<1x128xf32> to vector<128x128xf32>
    %5 = arith.addf %2, %4 : vector<128x128xf32>
    %cst_5 = arith.constant 0.000000e+00 : f32
    %6 = vector.broadcast %cst_5 : f32 to vector<128x128xf32>
    %7 = arith.subf %6, %5 : vector<128x128xf32>
    %8 = math.exp %7 : vector<128x128xf32>
    %cst_6 = arith.constant 1.000000e+00 : f32
    %9 = vector.broadcast %cst_6 : f32 to vector<128x128xf32>
    %10 = arith.addf %9, %8 : vector<128x128xf32>
    %11 = tpu.reciprocal %10 {approx = true} : vector<128x128xf32> -> vector<128x128xf32>
    %12 = arith.mulf %5, %11 : vector<128x128xf32>
    %13 = arith.truncf %12 : vector<128x128xf32> to vector<128x128xbf16>
    %c0_7 = arith.constant 0 : index
    %c0_8 = arith.constant 0 : index
    %14 = vector.load %arg4[%c0_7, %c0_8] : memref<128x128xbf16, #tpu.memory_space<vmem>>, vector<128x128xbf16>
    tpu.vector_store %arg4[%c0_7, %c0_8], %13 {strides = array<i32>} : memref<128x128xbf16, #tpu.memory_space<vmem>>, vector<128x128xbf16>,
    return
  }
  func.func @transform_0(%arg0: i32) -> (i32, i32) {
    %c0_i32 = arith.constant 0 : i32
    %c0_i32_0 = arith.constant 0 : i32
    return %arg0, %c0_i32 : i32, i32
  }
  func.func @transform_1(%arg0: i32) -> (i32, i32) {
    %c0_i32 = arith.constant 0 : i32
    %c0_i32_0 = arith.constant 0 : i32
    %c0_i32_1 = arith.constant 0 : i32
    return %c0_i32, %c0_i32_0 : i32, i32
  }
  func.func @transform_2(%arg0: i32) -> (i32, i32) {
    %c0_i32 = arith.constant 0 : i32
    %c0_i32_0 = arith.constant 0 : i32
    %c0_i32_1 = arith.constant 0 : i32
    return %c0_i32, %c0_i32_0 : i32, i32
  }
  func.func @transform_3(%arg0: i32) -> (i32, i32) {
    %c0_i32 = arith.constant 0 : i32
    %c0_i32_0 = arith.constant 0 : i32
    return %arg0, %c0_i32 : i32, i32
  }
}

module attributes {stable_mosaic.version = 11 : i64} {
  func.func @dwconv_se_pool_kernel(%arg0: i32, %arg1: memref<1x10x10x128xbf16, #tpu.memory_space<vmem>>, %arg2: memref<3x3x128xf32, #tpu.memory_space<vmem>>, %arg3: memref<1x128xf32, #tpu.memory_space<vmem>>, %arg4: memref<1x8x8x128xbf16, #tpu.memory_space<vmem>>, %arg5: memref<1x1x128xf32, #tpu.memory_space<vmem>>) attributes {dimension_semantics = [#tpu.dimension_semantics<parallel>], iteration_bounds = array<i64: 2>, scalar_prefetch = 0 : i64, scratch_operands = 0 : i64, tpu.core_type = #tpu.core_type<tc>, window_params = [{transform_indices = @transform_0, window_bounds = array<i64: 1, 10, 10, 128>}, {pipeline_mode = #tpu.pipeline_mode<synchronous>, transform_indices = @transform_1, window_bounds = array<i64: 3, 3, 128>}, {pipeline_mode = #tpu.pipeline_mode<synchronous>, transform_indices = @transform_2, window_bounds = array<i64: 1, 128>}, {transform_indices = @transform_3, window_bounds = array<i64: 1, 8, 8, 128>}, {transform_indices = @transform_4, window_bounds = array<i64: 1, 1, 128>}]} {
    %c0 = arith.constant 0 : index
    %c0_0 = arith.constant 0 : index
    %c0_1 = arith.constant 0 : index
    %c0_2 = arith.constant 0 : index
    %0 = vector.load %arg1[%c0, %c0_0, %c0_1, %c0_2] : memref<1x10x10x128xbf16, #tpu.memory_space<vmem>>, vector<1x10x10x128xbf16>
    %1 = vector.shape_cast %0 : vector<1x10x10x128xbf16> to vector<10x10x128xbf16>
    %2 = arith.extf %1 : vector<10x10x128xbf16> to vector<10x10x128xf32>
    %c0_3 = arith.constant 0 : index
    %c0_4 = arith.constant 0 : index
    %c0_5 = arith.constant 0 : index
    %3 = vector.load %arg2[%c0_3, %c0_4, %c0_5] : memref<3x3x128xf32, #tpu.memory_space<vmem>>, vector<3x3x128xf32>
    %cst = arith.constant 0.000000e+00 : f32
    %4 = vector.broadcast %cst : f32 to vector<8x8x128xf32>
    %5 = vector.extract_strided_slice %2 {offsets = [0, 0, 0], sizes = [8, 8, 128], strides = [1, 1, 1]} : vector<10x10x128xf32> to vector<8x8x128xf32>
    %6 = vector.extract_strided_slice %3 {offsets = [0, 0, 0], sizes = [1, 1, 128], strides = [1, 1, 1]} : vector<3x3x128xf32> to vector<1x1x128xf32>
    %7 = vector.shape_cast %6 : vector<1x1x128xf32> to vector<128xf32>
    %8 = vector.shape_cast %7 : vector<128xf32> to vector<1x1x128xf32>
    %9 = vector.broadcast %8 : vector<1x1x128xf32> to vector<8x8x128xf32>
    %10 = arith.mulf %5, %9 : vector<8x8x128xf32>
    %11 = arith.addf %4, %10 : vector<8x8x128xf32>
    %12 = vector.extract_strided_slice %2 {offsets = [0, 1, 0], sizes = [8, 8, 128], strides = [1, 1, 1]} : vector<10x10x128xf32> to vector<8x8x128xf32>
    %13 = vector.extract_strided_slice %3 {offsets = [0, 1, 0], sizes = [1, 1, 128], strides = [1, 1, 1]} : vector<3x3x128xf32> to vector<1x1x128xf32>
    %14 = vector.shape_cast %13 : vector<1x1x128xf32> to vector<128xf32>
    %15 = vector.shape_cast %14 : vector<128xf32> to vector<1x1x128xf32>
    %16 = vector.broadcast %15 : vector<1x1x128xf32> to vector<8x8x128xf32>
    %17 = arith.mulf %12, %16 : vector<8x8x128xf32>
    %18 = arith.addf %11, %17 : vector<8x8x128xf32>
    %19 = vector.extract_strided_slice %2 {offsets = [0, 2, 0], sizes = [8, 8, 128], strides = [1, 1, 1]} : vector<10x10x128xf32> to vector<8x8x128xf32>
    %20 = vector.extract_strided_slice %3 {offsets = [0, 2, 0], sizes = [1, 1, 128], strides = [1, 1, 1]} : vector<3x3x128xf32> to vector<1x1x128xf32>
    %21 = vector.shape_cast %20 : vector<1x1x128xf32> to vector<128xf32>
    %22 = vector.shape_cast %21 : vector<128xf32> to vector<1x1x128xf32>
    %23 = vector.broadcast %22 : vector<1x1x128xf32> to vector<8x8x128xf32>
    %24 = arith.mulf %19, %23 : vector<8x8x128xf32>
    %25 = arith.addf %18, %24 : vector<8x8x128xf32>
    %26 = vector.extract_strided_slice %2 {offsets = [1, 0, 0], sizes = [8, 8, 128], strides = [1, 1, 1]} : vector<10x10x128xf32> to vector<8x8x128xf32>
    %27 = vector.extract_strided_slice %3 {offsets = [1, 0, 0], sizes = [1, 1, 128], strides = [1, 1, 1]} : vector<3x3x128xf32> to vector<1x1x128xf32>
    %28 = vector.shape_cast %27 : vector<1x1x128xf32> to vector<128xf32>
    %29 = vector.shape_cast %28 : vector<128xf32> to vector<1x1x128xf32>
    %30 = vector.broadcast %29 : vector<1x1x128xf32> to vector<8x8x128xf32>
    %31 = arith.mulf %26, %30 : vector<8x8x128xf32>
    %32 = arith.addf %25, %31 : vector<8x8x128xf32>
    %33 = vector.extract_strided_slice %2 {offsets = [1, 1, 0], sizes = [8, 8, 128], strides = [1, 1, 1]} : vector<10x10x128xf32> to vector<8x8x128xf32>
    %34 = vector.extract_strided_slice %3 {offsets = [1, 1, 0], sizes = [1, 1, 128], strides = [1, 1, 1]} : vector<3x3x128xf32> to vector<1x1x128xf32>
    %35 = vector.shape_cast %34 : vector<1x1x128xf32> to vector<128xf32>
    %36 = vector.shape_cast %35 : vector<128xf32> to vector<1x1x128xf32>
    %37 = vector.broadcast %36 : vector<1x1x128xf32> to vector<8x8x128xf32>
    %38 = arith.mulf %33, %37 : vector<8x8x128xf32>
    %39 = arith.addf %32, %38 : vector<8x8x128xf32>
    %40 = vector.extract_strided_slice %2 {offsets = [1, 2, 0], sizes = [8, 8, 128], strides = [1, 1, 1]} : vector<10x10x128xf32> to vector<8x8x128xf32>
    %41 = vector.extract_strided_slice %3 {offsets = [1, 2, 0], sizes = [1, 1, 128], strides = [1, 1, 1]} : vector<3x3x128xf32> to vector<1x1x128xf32>
    %42 = vector.shape_cast %41 : vector<1x1x128xf32> to vector<128xf32>
    %43 = vector.shape_cast %42 : vector<128xf32> to vector<1x1x128xf32>
    %44 = vector.broadcast %43 : vector<1x1x128xf32> to vector<8x8x128xf32>
    %45 = arith.mulf %40, %44 : vector<8x8x128xf32>
    %46 = arith.addf %39, %45 : vector<8x8x128xf32>
    %47 = vector.extract_strided_slice %2 {offsets = [2, 0, 0], sizes = [8, 8, 128], strides = [1, 1, 1]} : vector<10x10x128xf32> to vector<8x8x128xf32>
    %48 = vector.extract_strided_slice %3 {offsets = [2, 0, 0], sizes = [1, 1, 128], strides = [1, 1, 1]} : vector<3x3x128xf32> to vector<1x1x128xf32>
    %49 = vector.shape_cast %48 : vector<1x1x128xf32> to vector<128xf32>
    %50 = vector.shape_cast %49 : vector<128xf32> to vector<1x1x128xf32>
    %51 = vector.broadcast %50 : vector<1x1x128xf32> to vector<8x8x128xf32>
    %52 = arith.mulf %47, %51 : vector<8x8x128xf32>
    %53 = arith.addf %46, %52 : vector<8x8x128xf32>
    %54 = vector.extract_strided_slice %2 {offsets = [2, 1, 0], sizes = [8, 8, 128], strides = [1, 1, 1]} : vector<10x10x128xf32> to vector<8x8x128xf32>
    %55 = vector.extract_strided_slice %3 {offsets = [2, 1, 0], sizes = [1, 1, 128], strides = [1, 1, 1]} : vector<3x3x128xf32> to vector<1x1x128xf32>
    %56 = vector.shape_cast %55 : vector<1x1x128xf32> to vector<128xf32>
    %57 = vector.shape_cast %56 : vector<128xf32> to vector<1x1x128xf32>
    %58 = vector.broadcast %57 : vector<1x1x128xf32> to vector<8x8x128xf32>
    %59 = arith.mulf %54, %58 : vector<8x8x128xf32>
    %60 = arith.addf %53, %59 : vector<8x8x128xf32>
    %61 = vector.extract_strided_slice %2 {offsets = [2, 2, 0], sizes = [8, 8, 128], strides = [1, 1, 1]} : vector<10x10x128xf32> to vector<8x8x128xf32>
    %62 = vector.extract_strided_slice %3 {offsets = [2, 2, 0], sizes = [1, 1, 128], strides = [1, 1, 1]} : vector<3x3x128xf32> to vector<1x1x128xf32>
    %63 = vector.shape_cast %62 : vector<1x1x128xf32> to vector<128xf32>
    %64 = vector.shape_cast %63 : vector<128xf32> to vector<1x1x128xf32>
    %65 = vector.broadcast %64 : vector<1x1x128xf32> to vector<8x8x128xf32>
    %66 = arith.mulf %61, %65 : vector<8x8x128xf32>
    %67 = arith.addf %60, %66 : vector<8x8x128xf32>
    %c0_6 = arith.constant 0 : index
    %c0_7 = arith.constant 0 : index
    %68 = vector.load %arg3[%c0_6, %c0_7] : memref<1x128xf32, #tpu.memory_space<vmem>>, vector<1x128xf32>
    %69 = vector.shape_cast %68 : vector<1x128xf32> to vector<1x1x128xf32>
    %70 = vector.broadcast %69 : vector<1x1x128xf32> to vector<8x8x128xf32>
    %71 = arith.addf %67, %70 : vector<8x8x128xf32>
    %cst_8 = arith.constant 0.000000e+00 : f32
    %72 = vector.broadcast %cst_8 : f32 to vector<8x8x128xf32>
    %73 = arith.subf %72, %71 : vector<8x8x128xf32>
    %74 = math.exp %73 : vector<8x8x128xf32>
    %cst_9 = arith.constant 1.000000e+00 : f32
    %75 = vector.broadcast %cst_9 : f32 to vector<8x8x128xf32>
    %76 = arith.addf %75, %74 : vector<8x8x128xf32>
    %77 = tpu.reciprocal %76 {approx = true} : vector<8x8x128xf32> -> vector<8x8x128xf32>
    %78 = arith.mulf %71, %77 : vector<8x8x128xf32>
    %79 = arith.truncf %78 : vector<8x8x128xf32> to vector<8x8x128xbf16>
    %c0_10 = arith.constant 0 : index
    %c0_11 = arith.constant 0 : index
    %c0_12 = arith.constant 0 : index
    %c0_13 = arith.constant 0 : index
    %80 = vector.load %arg4[%c0_10, %c0_11, %c0_12, %c0_13] : memref<1x8x8x128xbf16, #tpu.memory_space<vmem>>, vector<1x8x8x128xbf16>
    %81 = vector.shape_cast %80 : vector<1x8x8x128xbf16> to vector<8x8x128xbf16>
    %82 = vector.shape_cast %79 : vector<8x8x128xbf16> to vector<1x8x8x128xbf16>
    tpu.vector_store %arg4[%c0_10, %c0_11, %c0_12, %c0_13], %82 {strides = array<i32>} : memref<1x8x8x128xbf16, #tpu.memory_space<vmem>>, vector<1x8x8x128xbf16>,
    %cst_14 = arith.constant dense<0.000000e+00> : vector<8x128xf32>
    %83 = vector.multi_reduction <add>, %78, %cst_14 [0] : vector<8x8x128xf32> to vector<8x128xf32>
    %cst_15 = arith.constant dense<0.000000e+00> : vector<128xf32>
    %84 = vector.multi_reduction <add>, %83, %cst_15 [0] : vector<8x128xf32> to vector<128xf32>
    %85 = vector.shape_cast %84 : vector<128xf32> to vector<1x128xf32>
    %c0_16 = arith.constant 0 : index
    %c0_17 = arith.constant 0 : index
    %c0_18 = arith.constant 0 : index
    %86 = vector.load %arg5[%c0_16, %c0_17, %c0_18] : memref<1x1x128xf32, #tpu.memory_space<vmem>>, vector<1x1x128xf32>
    %87 = vector.shape_cast %86 : vector<1x1x128xf32> to vector<1x128xf32>
    %88 = vector.shape_cast %85 : vector<1x128xf32> to vector<1x1x128xf32>
    tpu.vector_store %arg5[%c0_16, %c0_17, %c0_18], %88 {strides = array<i32>} : memref<1x1x128xf32, #tpu.memory_space<vmem>>, vector<1x1x128xf32>,
    return
  }
  func.func @transform_0(%arg0: i32) -> (i32, i32, i32, i32) {
    %c0_i32 = arith.constant 0 : i32
    %c0_i32_0 = arith.constant 0 : i32
    %c0_i32_1 = arith.constant 0 : i32
    %c0_i32_2 = arith.constant 0 : i32
    return %arg0, %c0_i32, %c0_i32_0, %c0_i32_1 : i32, i32, i32, i32
  }
  func.func @transform_1(%arg0: i32) -> (i32, i32, i32) {
    %c0_i32 = arith.constant 0 : i32
    %c0_i32_0 = arith.constant 0 : i32
    %c0_i32_1 = arith.constant 0 : i32
    %c0_i32_2 = arith.constant 0 : i32
    return %c0_i32, %c0_i32_0, %c0_i32_1 : i32, i32, i32
  }
  func.func @transform_2(%arg0: i32) -> (i32, i32) {
    %c0_i32 = arith.constant 0 : i32
    %c0_i32_0 = arith.constant 0 : i32
    %c0_i32_1 = arith.constant 0 : i32
    return %c0_i32, %c0_i32_0 : i32, i32
  }
  func.func @transform_3(%arg0: i32) -> (i32, i32, i32, i32) {
    %c0_i32 = arith.constant 0 : i32
    %c0_i32_0 = arith.constant 0 : i32
    %c0_i32_1 = arith.constant 0 : i32
    %c0_i32_2 = arith.constant 0 : i32
    return %arg0, %c0_i32, %c0_i32_0, %c0_i32_1 : i32, i32, i32, i32
  }
  func.func @transform_4(%arg0: i32) -> (i32, i32, i32) {
    %c0_i32 = arith.constant 0 : i32
    %c0_i32_0 = arith.constant 0 : i32
    %c0_i32_1 = arith.constant 0 : i32
    return %arg0, %c0_i32, %c0_i32_0 : i32, i32, i32
  }
}

module attributes {stable_mosaic.version = 11 : i64} {
  func.func @project_kernel(%arg0: i32, %arg1: i32, %arg2: memref<1x64x128xbf16, #tpu.memory_space<vmem>>, %arg3: memref<1x1x128xf32, #tpu.memory_space<vmem>>, %arg4: memref<128x128xbf16, #tpu.memory_space<vmem>>, %arg5: memref<1x128xf32, #tpu.memory_space<vmem>>, %arg6: memref<1x64x128xbf16, #tpu.memory_space<vmem>>, %arg7: memref<1x64x128xbf16, #tpu.memory_space<vmem>>) attributes {dimension_semantics = [#tpu.dimension_semantics<parallel>, #tpu.dimension_semantics<parallel>], iteration_bounds = array<i64: 2, 1>, scalar_prefetch = 0 : i64, scratch_operands = 0 : i64, tpu.core_type = #tpu.core_type<tc>, window_params = [{transform_indices = @transform_0, window_bounds = array<i64: 1, 64, 128>}, {transform_indices = @transform_1, window_bounds = array<i64: 1, 1, 128>}, {pipeline_mode = #tpu.pipeline_mode<synchronous>, transform_indices = @transform_2, window_bounds = array<i64: 128, 128>}, {pipeline_mode = #tpu.pipeline_mode<synchronous>, transform_indices = @transform_3, window_bounds = array<i64: 1, 128>}, {transform_indices = @transform_4, window_bounds = array<i64: 1, 64, 128>}, {transform_indices = @transform_5, window_bounds = array<i64: 1, 64, 128>}]} {
    %c0 = arith.constant 0 : index
    %c0_0 = arith.constant 0 : index
    %c0_1 = arith.constant 0 : index
    %0 = vector.load %arg2[%c0, %c0_0, %c0_1] : memref<1x64x128xbf16, #tpu.memory_space<vmem>>, vector<1x64x128xbf16>
    %1 = vector.shape_cast %0 : vector<1x64x128xbf16> to vector<64x128xbf16>
    %2 = arith.extf %1 : vector<64x128xbf16> to vector<64x128xf32>
    %c0_2 = arith.constant 0 : index
    %c0_3 = arith.constant 0 : index
    %c0_4 = arith.constant 0 : index
    %3 = vector.load %arg3[%c0_2, %c0_3, %c0_4] : memref<1x1x128xf32, #tpu.memory_space<vmem>>, vector<1x1x128xf32>
    %4 = vector.shape_cast %3 : vector<1x1x128xf32> to vector<1x128xf32>
    %5 = vector.broadcast %4 : vector<1x128xf32> to vector<64x128xf32>
    %6 = arith.mulf %2, %5 : vector<64x128xf32>
    %7 = arith.truncf %6 : vector<64x128xf32> to vector<64x128xbf16>
    %c0_5 = arith.constant 0 : index
    %c0_6 = arith.constant 0 : index
    %8 = vector.load %arg4[%c0_5, %c0_6] : memref<128x128xbf16, #tpu.memory_space<vmem>>, vector<128x128xbf16>
    %cst = arith.constant dense<0.000000e+00> : vector<64x128xf32>
    %9 = tpu.matmul %7, %8, %cst {dimension_numbers = #tpu.dot_dimension_numbers<[1], [0], [0], [1], [0, 0, 1, 1], [], []>} : vector<64x128xbf16>, vector<128x128xbf16>, vector<64x128xf32> -> vector<64x128xf32>
    %c0_7 = arith.constant 0 : index
    %c0_8 = arith.constant 0 : index
    %10 = vector.load %arg5[%c0_7, %c0_8] : memref<1x128xf32, #tpu.memory_space<vmem>>, vector<1x128xf32>
    %11 = vector.broadcast %10 : vector<1x128xf32> to vector<64x128xf32>
    %12 = arith.addf %9, %11 : vector<64x128xf32>
    %c0_9 = arith.constant 0 : index
    %c0_10 = arith.constant 0 : index
    %c0_11 = arith.constant 0 : index
    %13 = vector.load %arg6[%c0_9, %c0_10, %c0_11] : memref<1x64x128xbf16, #tpu.memory_space<vmem>>, vector<1x64x128xbf16>
    %14 = vector.shape_cast %13 : vector<1x64x128xbf16> to vector<64x128xbf16>
    %15 = arith.extf %14 : vector<64x128xbf16> to vector<64x128xf32>
    %16 = arith.addf %12, %15 : vector<64x128xf32>
    %17 = arith.truncf %16 : vector<64x128xf32> to vector<64x128xbf16>
    %c0_12 = arith.constant 0 : index
    %c0_13 = arith.constant 0 : index
    %c0_14 = arith.constant 0 : index
    %18 = vector.load %arg7[%c0_12, %c0_13, %c0_14] : memref<1x64x128xbf16, #tpu.memory_space<vmem>>, vector<1x64x128xbf16>
    %19 = vector.shape_cast %18 : vector<1x64x128xbf16> to vector<64x128xbf16>
    %20 = vector.shape_cast %17 : vector<64x128xbf16> to vector<1x64x128xbf16>
    tpu.vector_store %arg7[%c0_12, %c0_13, %c0_14], %20 {strides = array<i32>} : memref<1x64x128xbf16, #tpu.memory_space<vmem>>, vector<1x64x128xbf16>,
    return
  }
  func.func @transform_0(%arg0: i32, %arg1: i32) -> (i32, i32, i32) {
    %c0_i32 = arith.constant 0 : i32
    %c0_i32_0 = arith.constant 0 : i32
    return %arg0, %arg1, %c0_i32 : i32, i32, i32
  }
  func.func @transform_1(%arg0: i32, %arg1: i32) -> (i32, i32, i32) {
    %c0_i32 = arith.constant 0 : i32
    %c0_i32_0 = arith.constant 0 : i32
    %c0_i32_1 = arith.constant 0 : i32
    return %arg0, %c0_i32, %c0_i32_0 : i32, i32, i32
  }
  func.func @transform_2(%arg0: i32, %arg1: i32) -> (i32, i32) {
    %c0_i32 = arith.constant 0 : i32
    %c0_i32_0 = arith.constant 0 : i32
    %c0_i32_1 = arith.constant 0 : i32
    return %c0_i32, %c0_i32_0 : i32, i32
  }
  func.func @transform_3(%arg0: i32, %arg1: i32) -> (i32, i32) {
    %c0_i32 = arith.constant 0 : i32
    %c0_i32_0 = arith.constant 0 : i32
    %c0_i32_1 = arith.constant 0 : i32
    return %c0_i32, %c0_i32_0 : i32, i32
  }
  func.func @transform_4(%arg0: i32, %arg1: i32) -> (i32, i32, i32) {
    %c0_i32 = arith.constant 0 : i32
    %c0_i32_0 = arith.constant 0 : i32
    return %arg0, %arg1, %c0_i32 : i32, i32, i32
  }
  func.func @transform_5(%arg0: i32, %arg1: i32) -> (i32, i32, i32) {
    %c0_i32 = arith.constant 0 : i32
    %c0_i32_0 = arith.constant 0 : i32
    return %arg0, %arg1, %c0_i32 : i32, i32, i32
  }
}

module attributes {stable_mosaic.version = 11 : i64} {
  func.func @head_pool_kernel(%arg0: i32, %arg1: i32, %arg2: memref<1x64x128xbf16, #tpu.memory_space<vmem>>, %arg3: memref<128x128xbf16, #tpu.memory_space<vmem>>, %arg4: memref<1x128xf32, #tpu.memory_space<vmem>>, %arg5: memref<1x1x128xf32, #tpu.memory_space<vmem>>, %arg6: memref<1x128xf32, #tpu.memory_space<vmem>>) attributes {dimension_semantics = [#tpu.dimension_semantics<parallel>, #tpu.dimension_semantics<arbitrary>], iteration_bounds = array<i64: 2, 1>, scalar_prefetch = 0 : i64, scratch_operands = 1 : i64, tpu.core_type = #tpu.core_type<tc>, window_params = [{transform_indices = @transform_0, window_bounds = array<i64: 1, 64, 128>}, {pipeline_mode = #tpu.pipeline_mode<synchronous>, transform_indices = @transform_1, window_bounds = array<i64: 128, 128>}, {pipeline_mode = #tpu.pipeline_mode<synchronous>, transform_indices = @transform_2, window_bounds = array<i64: 1, 128>}, {transform_indices = @transform_3, window_bounds = array<i64: 1, 1, 128>}]} {
    %c0_i32 = arith.constant 0 : i32
    %0 = arith.cmpi eq, %arg1, %c0_i32 : i32
    %1 = arith.extui %0 : i1 to i32
    %c0_i32_0 = arith.constant 0 : i32
    %2 = arith.cmpi ne, %1, %c0_i32_0 : i32
    scf.if %2 {
      %cst_18 = arith.constant 0.000000e+00 : f32
      %33 = vector.broadcast %cst_18 : f32 to vector<1x128xf32>
      %c0_19 = arith.constant 0 : index
      %c0_20 = arith.constant 0 : index
      %34 = vector.load %arg6[%c0_19, %c0_20] : memref<1x128xf32, #tpu.memory_space<vmem>>, vector<1x128xf32>
      tpu.vector_store %arg6[%c0_19, %c0_20], %33 {strides = array<i32>} : memref<1x128xf32, #tpu.memory_space<vmem>>, vector<1x128xf32>,
    } else {
    }
    %c0 = arith.constant 0 : index
    %c0_1 = arith.constant 0 : index
    %c0_2 = arith.constant 0 : index
    %3 = vector.load %arg2[%c0, %c0_1, %c0_2] : memref<1x64x128xbf16, #tpu.memory_space<vmem>>, vector<1x64x128xbf16>
    %4 = vector.shape_cast %3 : vector<1x64x128xbf16> to vector<64x128xbf16>
    %c0_3 = arith.constant 0 : index
    %c0_4 = arith.constant 0 : index
    %5 = vector.load %arg3[%c0_3, %c0_4] : memref<128x128xbf16, #tpu.memory_space<vmem>>, vector<128x128xbf16>
    %cst = arith.constant dense<0.000000e+00> : vector<64x128xf32>
    %6 = tpu.matmul %4, %5, %cst {dimension_numbers = #tpu.dot_dimension_numbers<[1], [0], [0], [1], [0, 0, 1, 1], [], []>} : vector<64x128xbf16>, vector<128x128xbf16>, vector<64x128xf32> -> vector<64x128xf32>
    %c0_5 = arith.constant 0 : index
    %c0_6 = arith.constant 0 : index
    %7 = vector.load %arg4[%c0_5, %c0_6] : memref<1x128xf32, #tpu.memory_space<vmem>>, vector<1x128xf32>
    %8 = vector.broadcast %7 : vector<1x128xf32> to vector<64x128xf32>
    %9 = arith.addf %6, %8 : vector<64x128xf32>
    %cst_7 = arith.constant 0.000000e+00 : f32
    %10 = vector.broadcast %cst_7 : f32 to vector<64x128xf32>
    %11 = arith.subf %10, %9 : vector<64x128xf32>
    %12 = math.exp %11 : vector<64x128xf32>
    %cst_8 = arith.constant 1.000000e+00 : f32
    %13 = vector.broadcast %cst_8 : f32 to vector<64x128xf32>
    %14 = arith.addf %13, %12 : vector<64x128xf32>
    %15 = tpu.reciprocal %14 {approx = true} : vector<64x128xf32> -> vector<64x128xf32>
    %16 = arith.mulf %9, %15 : vector<64x128xf32>
    %17 = tpu.iota {dimensions = array<i32: 0>} : vector<64x128xi32>
    %c64_i32 = arith.constant 64 : i32
    %18 = arith.muli %arg1, %c64_i32 : i32
    %19 = vector.broadcast %18 : i32 to vector<64x128xi32>
    %20 = arith.addi %17, %19 : vector<64x128xi32>
    %c64_i32_9 = arith.constant 64 : i32
    %21 = vector.broadcast %c64_i32_9 : i32 to vector<64x128xi32>
    %22 = arith.cmpi slt, %20, %21 : vector<64x128xi32>
    %cst_10 = arith.constant 0.000000e+00 : f32
    %23 = vector.broadcast %cst_10 : f32 to vector<64x128xf32>
    %24 = arith.select %22, %16, %23 : vector<64x128xi1>, vector<64x128xf32>
    %c0_11 = arith.constant 0 : index
    %c0_12 = arith.constant 0 : index
    %25 = vector.load %arg6[%c0_11, %c0_12] : memref<1x128xf32, #tpu.memory_space<vmem>>, vector<1x128xf32>
    %cst_13 = arith.constant dense<0.000000e+00> : vector<128xf32>
    %26 = vector.multi_reduction <add>, %24, %cst_13 [0] : vector<64x128xf32> to vector<128xf32>
    %27 = vector.shape_cast %26 : vector<128xf32> to vector<1x128xf32>
    %28 = arith.addf %25, %27 : vector<1x128xf32>
    %c0_14 = arith.constant 0 : index
    %c0_15 = arith.constant 0 : index
    %29 = vector.load %arg6[%c0_14, %c0_15] : memref<1x128xf32, #tpu.memory_space<vmem>>, vector<1x128xf32>
    tpu.vector_store %arg6[%c0_14, %c0_15], %28 {strides = array<i32>} : memref<1x128xf32, #tpu.memory_space<vmem>>, vector<1x128xf32>,
    %c0_i32_16 = arith.constant 0 : i32
    %30 = arith.cmpi eq, %arg1, %c0_i32_16 : i32
    %31 = arith.extui %30 : i1 to i32
    %c0_i32_17 = arith.constant 0 : i32
    %32 = arith.cmpi ne, %31, %c0_i32_17 : i32
    scf.if %32 {
      %c0_18 = arith.constant 0 : index
      %c0_19 = arith.constant 0 : index
      %33 = vector.load %arg6[%c0_18, %c0_19] : memref<1x128xf32, #tpu.memory_space<vmem>>, vector<1x128xf32>
      %cst_20 = arith.constant 1.562500e-02 : f32
      %34 = vector.broadcast %cst_20 : f32 to vector<1x128xf32>
      %35 = arith.mulf %33, %34 : vector<1x128xf32>
      %c0_21 = arith.constant 0 : index
      %c0_22 = arith.constant 0 : index
      %c0_23 = arith.constant 0 : index
      %36 = vector.load %arg5[%c0_21, %c0_22, %c0_23] : memref<1x1x128xf32, #tpu.memory_space<vmem>>, vector<1x1x128xf32>
      %37 = vector.shape_cast %36 : vector<1x1x128xf32> to vector<1x128xf32>
      %38 = vector.shape_cast %35 : vector<1x128xf32> to vector<1x1x128xf32>
      tpu.vector_store %arg5[%c0_21, %c0_22, %c0_23], %38 {strides = array<i32>} : memref<1x1x128xf32, #tpu.memory_space<vmem>>, vector<1x1x128xf32>,
    } else {
    }
    return
  }
  func.func @transform_0(%arg0: i32, %arg1: i32) -> (i32, i32, i32) {
    %c0_i32 = arith.constant 0 : i32
    %c0_i32_0 = arith.constant 0 : i32
    return %arg0, %arg1, %c0_i32 : i32, i32, i32
  }
  func.func @transform_1(%arg0: i32, %arg1: i32) -> (i32, i32) {
    %c0_i32 = arith.constant 0 : i32
    %c0_i32_0 = arith.constant 0 : i32
    %c0_i32_1 = arith.constant 0 : i32
    return %c0_i32, %c0_i32_0 : i32, i32
  }
  func.func @transform_2(%arg0: i32, %arg1: i32) -> (i32, i32) {
    %c0_i32 = arith.constant 0 : i32
    %c0_i32_0 = arith.constant 0 : i32
    %c0_i32_1 = arith.constant 0 : i32
    return %c0_i32, %c0_i32_0 : i32, i32
  }
  func.func @transform_3(%arg0: i32, %arg1: i32) -> (i32, i32, i32) {
    %c0_i32 = arith.constant 0 : i32
    %c0_i32_0 = arith.constant 0 : i32
    %c0_i32_1 = arith.constant 0 : i32
    return %arg0, %c0_i32, %c0_i32_0 : i32, i32, i32
  }
}

</mosaic_0001>

<llo_original>
// kernel: diabetic_efficientnet_forward.6
$region0: #{diabetic_efficientnet_forward.6}
  #allocation0 [shape = 'u32[]', space=smem, size = 0x4, offset = 0x4, fixed_abs, tag = 'smem constant byte address 0x4 - core index']
  #allocation1 [shape = 'u32[72,128]{1,0:T(1,128)}', space=vmem, size = 0x9000, scoped, tag = 'internal scratch']
  %s0 = inlined_call_operand.vmem [shape: bf16[128,128], index: 0, kind: input, shape index: {}]
  %s1 = inlined_call_operand.vmem [shape: bf16[128,128], index: 1, kind: input, shape index: {}]
  %s2 = inlined_call_operand.vmem [shape: f32[1,128], index: 2, kind: input, shape index: {}]
  %s3 = inlined_call_operand.vmem [shape: bf16[128,128], index: 3, kind: output, shape index: {}]
  %s4 = sld [smem:[#allocation0]]
  $region22: #{diabetic_efficientnet_forward.6} parent=0
    _
  %s6 = ssub.s32 1, %s4
  %s7 = scalar_select 0, %s6, %s4
  // Predicated region
  $region2: #{diabetic_efficientnet_forward.6} parent=0 // pred_check
    _
  $region3: #{diabetic_efficientnet_forward.6} parent=0 // pred_check_branch
    %9 = sbr.rel (0) target = $region5
  $region4: #{diabetic_efficientnet_forward.6} parent=0 // pred_region
    _
  $region5: #{diabetic_efficientnet_forward.6} parent=0 // pred_fallthru
    _
  // Predicated region
  $region6: #{diabetic_efficientnet_forward.6} parent=0 // pred_check
    _
  $region7: #{diabetic_efficientnet_forward.6} parent=0 // pred_check_branch
    %11 = sbr.rel (0) target = $region9
  $region8: #{diabetic_efficientnet_forward.6} parent=0 // pred_region
    _
  $region9: #{diabetic_efficientnet_forward.6} parent=0 // pred_fallthru
    _
  // Predicated region
  $region10: #{diabetic_efficientnet_forward.6} parent=0 // pred_check
    _
  $region11: #{diabetic_efficientnet_forward.6} parent=0 // pred_check_branch
    %13 = sbr.rel (0) target = $region13
  $region12: #{diabetic_efficientnet_forward.6} parent=0 // pred_region
    _
  $region13: #{diabetic_efficientnet_forward.6} parent=0 // pred_fallthru
    _
  %v14 = vld [vmem:[%s0] sm:$0xf]
  %v15 = vld [vmem:[%s0 + $0x4] sm:$0xf]
  %v16 = vld [vmem:[%s0 + $0x8] sm:$0xf]
  %v17 = vld [vmem:[%s0 + $0xc] sm:$0xf]
  %v18 = vld [vmem:[%s0 + $0x10] sm:$0xf]
  %v19 = vld [vmem:[%s0 + $0x14] sm:$0xf]
  %v20 = vld [vmem:[%s0 + $0x18] sm:$0xf]
  %v21 = vld [vmem:[%s0 + $0x1c] sm:$0xf]
  %v22 = vld [vmem:[%s0 + $0x20] sm:$0xf]
  %v23 = vld [vmem:[%s0 + $0x24] sm:$0xf]
  %v24 = vld [vmem:[%s0 + $0x28] sm:$0xf]
  %v25 = vld [vmem:[%s0 + $0x2c] sm:$0xf]
  %v26 = vld [vmem:[%s0 + $0x30] sm:$0xf]
  %v27 = vld [vmem:[%s0 + $0x34] sm:$0xf]
  %v28 = vld [vmem:[%s0 + $0x38] sm:$0xf]
  %v29 = vld [vmem:[%s0 + $0x3c] sm:$0xf]
  %v30 = vld [vmem:[%s1] sm:$0xf]
  %v31 = vld [vmem:[%s1 + $0x4] sm:$0xf]
  %v32 = vld [vmem:[%s1 + $0x8] sm:$0xf]
  %v33 = vld [vmem:[%s1 + $0xc] sm:$0xf]
  %v34 = vld [vmem:[%s1 + $0x10] sm:$0xf]
  %v35 = vld [vmem:[%s1 + $0x14] sm:$0xf]
  %v36 = vld [vmem:[%s1 + $0x18] sm:$0xf]
  %v37 = vld [vmem:[%s1 + $0x1c] sm:$0xf]
  %v38 = vld [vmem:[%s1 + $0x20] sm:$0xf]
  %v39 = vld [vmem:[%s1 + $0x24] sm:$0xf]
  %v40 = vld [vmem:[%s1 + $0x28] sm:$0xf]
  %v41 = vld [vmem:[%s1 + $0x2c] sm:$0xf]
  %v42 = vld [vmem:[%s1 + $0x30] sm:$0xf]
  %v43 = vld [vmem:[%s1 + $0x34] sm:$0xf]
  %v44 = vld [vmem:[%s1 + $0x38] sm:$0xf]
  %v45 = vld [vmem:[%s1 + $0x3c] sm:$0xf]
  %v46 = vld [vmem:[%s2] sm:$0x1]
  %v48 = vperm.slane %v46, 0
  %v66 = vunpack.c.l.b16 %v14
  %v67 = vunpack.c.l.b16 %v15
  %v68 = vunpack.c.l.b16 %v16
  %v69 = vunpack.c.l.b16 %v17
  %v70 = vunpack.c.l.b16 %v18
  %v71 = vunpack.c.l.b16 %v19
  %v72 = vunpack.c.l.b16 %v20
  %v73 = vunpack.c.l.b16 %v21
  %v74 = vunpack.c.l.b16 %v22
  %v75 = vunpack.c.l.b16 %v23
  %v76 = vunpack.c.l.b16 %v24
  %v77 = vunpack.c.l.b16 %v25
  %v78 = vunpack.c.l.b16 %v26
  %v79 = vunpack.c.l.b16 %v27
  %v80 = vunpack.c.l.b16 %v28
  %v81 = vunpack.c.l.b16 %v29
  %v82 = vpack.c.b16 %v67, %v66
  %v83 = vpack.c.b16 %v69, %v68
  %v84 = vpack.c.b16 %v71, %v70
  %v85 = vpack.c.b16 %v73, %v72
  %v86 = vpack.c.b16 %v75, %v74
  %v87 = vpack.c.b16 %v77, %v76
  %v88 = vpack.c.b16 %v79, %v78
  %v89 = vpack.c.b16 %v81, %v80
  %v114 = vunpack.c.l.b16 %v30
  %v115 = vunpack.c.l.b16 %v31
  %v116 = vunpack.c.l.b16 %v32
  %v117 = vunpack.c.l.b16 %v33
  %v118 = vunpack.c.l.b16 %v34
  %v119 = vunpack.c.l.b16 %v35
  %v120 = vunpack.c.l.b16 %v36
  %v121 = vunpack.c.l.b16 %v37
  %v122 = vunpack.c.l.b16 %v38
  %v123 = vunpack.c.l.b16 %v39
  %v124 = vunpack.c.l.b16 %v40
  %v125 = vunpack.c.l.b16 %v41
  %v126 = vunpack.c.l.b16 %v42
  %v127 = vunpack.c.l.b16 %v43
  %v128 = vunpack.c.l.b16 %v44
  %v129 = vunpack.c.l.b16 %v45
  %v130 = vpack.c.b16 %v115, %v114
  %v131 = vpack.c.b16 %v117, %v116
  %v132 = vpack.c.b16 %v119, %v118
  %v133 = vpack.c.b16 %v121, %v120
  %v134 = vpack.c.b16 %v123, %v122
  %v135 = vpack.c.b16 %v125, %v124
  %v136 = vpack.c.b16 %v127, %v126
  %v137 = vpack.c.b16 %v129, %v128
  %146 = vmatpush.bf16.msra.mxu0 %v137
  %147 = vmatpush.bf16.msra.mxu0 %v136
  %148 = vmatpush.bf16.msra.mxu0 %v135
  %149 = vmatpush.bf16.msra.mxu0 %v134
  %150 = vmatpush.bf16.msra.mxu0 %v133
  %151 = vmatpush.bf16.msra.mxu0 %v132
  %152 = vmatpush.bf16.msra.mxu0 %v131
  %153 = vmatpush.bf16.msra.mxu0 %v130
  %154 = vmatmul.bf16.gmra.mxu0 %v82
  %v155 = vpop.f32.mrf.mxu0
  %v156 = vadd.f32 %v48, %v155
  %v157 = vpop.f32.mrf.mxu0
  %v158 = vadd.f32 %v48, %v157
  %159 = vmatmul.bf16.gmra.mxu0 %v83
  %v160 = vpop.f32.mrf.mxu0
  %v161 = vadd.f32 %v48, %v160
  %v162 = vpop.f32.mrf.mxu0
  %v163 = vadd.f32 %v48, %v162
  %164 = vmatmul.bf16.gmra.mxu0 %v84
  %v165 = vpop.f32.mrf.mxu0
  %v166 = vadd.f32 %v48, %v165
  %v167 = vpop.f32.mrf.mxu0
  %v168 = vadd.f32 %v48, %v167
  %169 = vmatmul.bf16.gmra.mxu0 %v85
  %v170 = vpop.f32.mrf.mxu0
  %v171 = vadd.f32 %v48, %v170
  %v172 = vpop.f32.mrf.mxu0
  %v173 = vadd.f32 %v48, %v172
  %174 = vmatmul.bf16.gmra.mxu0 %v86
  %v175 = vpop.f32.mrf.mxu0
  %v176 = vadd.f32 %v48, %v175
  %v177 = vpop.f32.mrf.mxu0
  %v178 = vadd.f32 %v48, %v177
  %179 = vmatmul.bf16.gmra.mxu0 %v87
  %v180 = vpop.f32.mrf.mxu0
  %v181 = vadd.f32 %v48, %v180
  %v182 = vpop.f32.mrf.mxu0
  %v183 = vadd.f32 %v48, %v182
  %184 = vmatmul.bf16.gmra.mxu0 %v88
  %v185 = vpop.f32.mrf.mxu0
  %v186 = vadd.f32 %v48, %v185
  %v187 = vpop.f32.mrf.mxu0
  %v188 = vadd.f32 %v48, %v187
  %189 = vmatmul.bf16.gmra.mxu0 %v89
  %v190 = vpop.f32.mrf.mxu0
  %v191 = vadd.f32 %v48, %v190
  %v192 = vpop.f32.mrf.mxu0
  %v193 = vadd.f32 %v48, %v192
  %194 = vdwg.mxu0
  %v195 = vsub.f32 0.0, %v156
  %v196 = vsub.f32 0.0, %v158
  %v197 = vsub.f32 0.0, %v161
  %v198 = vsub.f32 0.0, %v163
  %v199 = vsub.f32 0.0, %v166
  %v200 = vsub.f32 0.0, %v168
  %v201 = vsub.f32 0.0, %v171
  %v202 = vsub.f32 0.0, %v173
  %v203 = vsub.f32 0.0, %v176
  %v204 = vsub.f32 0.0, %v178
  %v205 = vsub.f32 0.0, %v181
  %v206 = vsub.f32 0.0, %v183
  %v207 = vsub.f32 0.0, %v186
  %v208 = vsub.f32 0.0, %v188
  %v209 = vsub.f32 0.0, %v191
  %v210 = vsub.f32 0.0, %v193
  %v211 = vmul.f32 %v195, 1.442695
  %v212 = vpow.pop %v211
  %v213 = vmul.f32 %v196, 1.442695
  %v214 = vpow.pop %v213
  %v215 = vmul.f32 %v197, 1.442695
  %v216 = vpow.pop %v215
  %v217 = vmul.f32 %v198, 1.442695
  %v218 = vpow.pop %v217
  %v219 = vmul.f32 %v199, 1.442695
  %v220 = vpow.pop %v219
  %v221 = vmul.f32 %v200, 1.442695
  %v222 = vpow.pop %v221
  %v223 = vmul.f32 %v201, 1.442695
  %v224 = vpow.pop %v223
  %v225 = vmul.f32 %v202, 1.442695
  %v226 = vpow.pop %v225
  %v227 = vmul.f32 %v203, 1.442695
  %v228 = vpow.pop %v227
  %v229 = vmul.f32 %v204, 1.442695
  %v230 = vpow.pop %v229
  %v231 = vmul.f32 %v205, 1.442695
  %v232 = vpow.pop %v231
  %v233 = vmul.f32 %v206, 1.442695
  %v234 = vpow.pop %v233
  %v235 = vmul.f32 %v207, 1.442695
  %v236 = vpow.pop %v235
  %v237 = vmul.f32 %v208, 1.442695
  %v238 = vpow.pop %v237
  %v239 = vmul.f32 %v209, 1.442695
  %v240 = vpow.pop %v239
  %v241 = vmul.f32 %v210, 1.442695
  %v242 = vpow.pop %v241
  %v243 = vadd.f32 %v212, 1.0
  %v244 = vadd.f32 %v214, 1.0
  %v245 = vadd.f32 %v216, 1.0
  %v246 = vadd.f32 %v218, 1.0
  %v247 = vadd.f32 %v220, 1.0
  %v248 = vadd.f32 %v222, 1.0
  %v249 = vadd.f32 %v224, 1.0
  %v250 = vadd.f32 %v226, 1.0
  %v251 = vadd.f32 %v228, 1.0
  %v252 = vadd.f32 %v230, 1.0
  %v253 = vadd.f32 %v232, 1.0
  %v254 = vadd.f32 %v234, 1.0
  %v255 = vadd.f32 %v236, 1.0
  %v256 = vadd.f32 %v238, 1.0
  %v257 = vadd.f32 %v240, 1.0
  %v258 = vadd.f32 %v242, 1.0
  %v259 = vrcp.pop %v243
  %v260 = vrcp.pop %v244
  %v261 = vrcp.pop %v245
  %v262 = vrcp.pop %v246
  %v263 = vrcp.pop %v247
  %v264 = vrcp.pop %v248
  %v265 = vrcp.pop %v249
  %v266 = vrcp.pop %v250
  %v267 = vrcp.pop %v251
  %v268 = vrcp.pop %v252
  %v269 = vrcp.pop %v253
  %v270 = vrcp.pop %v254
  %v271 = vrcp.pop %v255
  %v272 = vrcp.pop %v256
  %v273 = vrcp.pop %v257
  %v274 = vrcp.pop %v258
  %v275 = vmul.f32 %v156, %v259
  %v276 = vmul.f32 %v158, %v260
  %v277 = vmul.f32 %v161, %v261
  %v278 = vmul.f32 %v163, %v262
  %v279 = vmul.f32 %v166, %v263
  %v280 = vmul.f32 %v168, %v264
  %v281 = vmul.f32 %v171, %v265
  %v282 = vmul.f32 %v173, %v266
  %v283 = vmul.f32 %v176, %v267
  %v284 = vmul.f32 %v178, %v268
  %v285 = vmul.f32 %v181, %v269
  %v286 = vmul.f32 %v183, %v270
  %v287 = vmul.f32 %v186, %v271
  %v288 = vmul.f32 %v188, %v272
  %v289 = vmul.f32 %v191, %v273
  %v290 = vmul.f32 %v193, %v274
  %v291 = vpack.c.bf16 %v275, %v275
  %v292 = vpack.c.bf16 %v276, %v276
  %v293 = vpack.c.bf16 %v277, %v277
  %v294 = vpack.c.bf16 %v278, %v278
  %v295 = vpack.c.bf16 %v279, %v279
  %v296 = vpack.c.bf16 %v280, %v280
  %v297 = vpack.c.bf16 %v281, %v281
  %v298 = vpack.c.bf16 %v282, %v282
  %v299 = vpack.c.bf16 %v283, %v283
  %v300 = vpack.c.bf16 %v284, %v284
  %v301 = vpack.c.bf16 %v285, %v285
  %v302 = vpack.c.bf16 %v286, %v286
  %v303 = vpack.c.bf16 %v287, %v287
  %v304 = vpack.c.bf16 %v288, %v288
  %v305 = vpack.c.bf16 %v289, %v289
  %v306 = vpack.c.bf16 %v290, %v290
  %307 = vst [vmem:[%s3] sm:$0xf] %v291
  %308 = vst [vmem:[%s3 + $0x4] sm:$0xf] %v292
  %309 = vst [vmem:[%s3 + $0x8] sm:$0xf] %v293
  %310 = vst [vmem:[%s3 + $0xc] sm:$0xf] %v294
  %311 = vst [vmem:[%s3 + $0x10] sm:$0xf] %v295
  %312 = vst [vmem:[%s3 + $0x14] sm:$0xf] %v296
  %313 = vst [vmem:[%s3 + $0x18] sm:$0xf] %v297
  %314 = vst [vmem:[%s3 + $0x1c] sm:$0xf] %v298
  %315 = vst [vmem:[%s3 + $0x20] sm:$0xf] %v299
  %316 = vst [vmem:[%s3 + $0x24] sm:$0xf] %v300
  %317 = vst [vmem:[%s3 + $0x28] sm:$0xf] %v301
  %318 = vst [vmem:[%s3 + $0x2c] sm:$0xf] %v302
  %319 = vst [vmem:[%s3 + $0x30] sm:$0xf] %v303
  %320 = vst [vmem:[%s3 + $0x34] sm:$0xf] %v304
  %321 = vst [vmem:[%s3 + $0x38] sm:$0xf] %v305
  %322 = vst [vmem:[%s3 + $0x3c] sm:$0xf] %v306
  // Predicated region
  $region14: #{diabetic_efficientnet_forward.6} parent=0 // pred_check
    _
  $region15: #{diabetic_efficientnet_forward.6} parent=0 // pred_check_branch
    %324 = sbr.rel (0) target = $region17
  $region16: #{diabetic_efficientnet_forward.6} parent=0 // pred_region
    _
  $region17: #{diabetic_efficientnet_forward.6} parent=0 // pred_fallthru
    _
  // Predicated region
  $region18: #{diabetic_efficientnet_forward.6} parent=0 // pred_check
    _
  $region19: #{diabetic_efficientnet_forward.6} parent=0 // pred_check_branch
    %326 = sbr.rel (0) target = $region21
  $region20: #{diabetic_efficientnet_forward.6} parent=0 // pred_region
    _
  $region21: #{diabetic_efficientnet_forward.6} parent=0 // pred_fallthru
    _

// kernel: diabetic_efficientnet_forward.5
$region0: #{diabetic_efficientnet_forward.5}
  #allocation0 [shape = 'u32[]', space=smem, size = 0x4, offset = 0x4, fixed_abs, tag = 'smem constant byte address 0x4 - core index']
  #allocation1 [shape = 'u32[72,128]{1,0:T(1,128)}', space=vmem, size = 0x9000, scoped, tag = 'internal scratch']
  %s0 = inlined_call_operand.vmem [shape: bf16[128,27], index: 0, kind: input, shape index: {}]
  %s1 = inlined_call_operand.vmem [shape: bf16[27,128], index: 1, kind: input, shape index: {}]
  %s2 = inlined_call_operand.vmem [shape: f32[1,128], index: 2, kind: input, shape index: {}]
  %s3 = inlined_call_operand.vmem [shape: bf16[128,128], index: 3, kind: output, shape index: {}]
  %s4 = sld [smem:[#allocation0]]
  $region22: #{diabetic_efficientnet_forward.5} parent=0
    _
  %s6 = ssub.s32 1, %s4
  %s7 = scalar_select 0, %s6, %s4
  // Predicated region
  $region2: #{diabetic_efficientnet_forward.5} parent=0 // pred_check
    _
  $region3: #{diabetic_efficientnet_forward.5} parent=0 // pred_check_branch
    %9 = sbr.rel (0) target = $region5
  $region4: #{diabetic_efficientnet_forward.5} parent=0 // pred_region
    _
  $region5: #{diabetic_efficientnet_forward.5} parent=0 // pred_fallthru
    _
  // Predicated region
  $region6: #{diabetic_efficientnet_forward.5} parent=0 // pred_check
    _
  $region7: #{diabetic_efficientnet_forward.5} parent=0 // pred_check_branch
    %11 = sbr.rel (0) target = $region9
  $region8: #{diabetic_efficientnet_forward.5} parent=0 // pred_region
    _
  $region9: #{diabetic_efficientnet_forward.5} parent=0 // pred_fallthru
    _
  // Predicated region
  $region10: #{diabetic_efficientnet_forward.5} parent=0 // pred_check
    _
  $region11: #{diabetic_efficientnet_forward.5} parent=0 // pred_check_branch
    %13 = sbr.rel (0) target = $region13
  $region12: #{diabetic_efficientnet_forward.5} parent=0 // pred_region
    _
  $region13: #{diabetic_efficientnet_forward.5} parent=0 // pred_fallthru
    _
  %v15 = vld [vmem:[%s0] sm:$0xf]
  %v16 = vld [vmem:[%s0 + $0x4] sm:$0xf]
  %v17 = vld [vmem:[%s0 + $0x8] sm:$0xf]
  %v18 = vld [vmem:[%s0 + $0xc] sm:$0xf]
  %v19 = vld [vmem:[%s0 + $0x10] sm:$0xf]
  %v20 = vld [vmem:[%s0 + $0x14] sm:$0xf]
  %v21 = vld [vmem:[%s0 + $0x18] sm:$0xf]
  %v22 = vld [vmem:[%s0 + $0x1c] sm:$0xf]
  %v23 = vld [vmem:[%s0 + $0x20] sm:$0xf]
  %v24 = vld [vmem:[%s0 + $0x24] sm:$0xf]
  %v25 = vld [vmem:[%s0 + $0x28] sm:$0xf]
  %v26 = vld [vmem:[%s0 + $0x2c] sm:$0xf]
  %v27 = vld [vmem:[%s0 + $0x30] sm:$0xf]
  %v28 = vld [vmem:[%s0 + $0x34] sm:$0xf]
  %v29 = vld [vmem:[%s0 + $0x38] sm:$0xf]
  %v30 = vld [vmem:[%s0 + $0x3c] sm:$0xf]
  %v31 = vld [vmem:[%s1] sm:$0xf]
  %v32 = vld [vmem:[%s1 + $0x4] sm:$0xf]
  %v33 = vld [vmem:[%s1 + $0x8] sm:$0xf]
  %v34 = vld [vmem:[%s1 + $0xc] sm:$0x3]
  %v35 = vld [vmem:[%s2] sm:$0x1]
  %v37 = vperm.slane %v35, 0
  %v55 = vunpack.c.l.b16 %v15
  %v56 = vunpack.c.l.b16 %v16
  %v57 = vunpack.c.l.b16 %v17
  %v58 = vunpack.c.l.b16 %v18
  %v59 = vunpack.c.l.b16 %v19
  %v60 = vunpack.c.l.b16 %v20
  %v61 = vunpack.c.l.b16 %v21
  %v62 = vunpack.c.l.b16 %v22
  %v63 = vunpack.c.l.b16 %v23
  %v64 = vunpack.c.l.b16 %v24
  %v65 = vunpack.c.l.b16 %v25
  %v66 = vunpack.c.l.b16 %v26
  %v67 = vunpack.c.l.b16 %v27
  %v68 = vunpack.c.l.b16 %v28
  %v69 = vunpack.c.l.b16 %v29
  %v70 = vunpack.c.l.b16 %v30
  %v71 = vpack.c.b16 %v56, %v55
  %v72 = vpack.c.b16 %v58, %v57
  %v73 = vpack.c.b16 %v60, %v59
  %v74 = vpack.c.b16 %v62, %v61
  %v75 = vpack.c.b16 %v64, %v63
  %v76 = vpack.c.b16 %v66, %v65
  %v77 = vpack.c.b16 %v68, %v67
  %v78 = vpack.c.b16 %v70, %v69
  %v83 = vunpack.c.l.b16 %v31
  %v84 = vunpack.c.l.b16 %v32
  %v85 = vunpack.c.l.b16 %v33
  %v86 = vunpack.c.l.b16 %v34
  %v87 = vpack.c.b16 %v84, %v83
  %v88 = vpack.c.b16 %v86, %v85
  %vm90 = vcmask 220160
  %v92 = vsel %vm90, %v71, 0
  %v95 = vsel %vm90, %v72, 0
  %v98 = vsel %vm90, %v73, 0
  %v101 = vsel %vm90, %v74, 0
  %v104 = vsel %vm90, %v75, 0
  %v107 = vsel %vm90, %v76, 0
  %v110 = vsel %vm90, %v77, 0
  %v113 = vsel %vm90, %v78, 0
  %vm115 = vcmask 1044480
  %vm116 = vcmask 1045504
  %v117 = vsel %vm115, 4294967295, 65535
  %v118 = vsel %vm116, %v117, 0
  %v120 = vand.u32 %v88, %v118
  %122 = vmatpush.bf16.msra.mxu0 0
  %123 = vmatpush.bf16.msra.mxu0 0
  %124 = vmatpush.bf16.msra.mxu0 0
  %125 = vmatpush.bf16.msra.mxu0 0
  %126 = vmatpush.bf16.msra.mxu0 0
  %127 = vmatpush.bf16.msra.mxu0 0
  %128 = vmatpush.bf16.msra.mxu0 %v120
  %129 = vmatpush.bf16.msra.mxu0 %v87
  %130 = vmatmul.bf16.gmra.mxu0 %v92
  %v131 = vpop.f32.mrf.mxu0
  %v132 = vadd.f32 %v37, %v131
  %v133 = vpop.f32.mrf.mxu0
  %v134 = vadd.f32 %v37, %v133
  %135 = vmatmul.bf16.gmra.mxu0 %v95
  %v136 = vpop.f32.mrf.mxu0
  %v137 = vadd.f32 %v37, %v136
  %v138 = vpop.f32.mrf.mxu0
  %v139 = vadd.f32 %v37, %v138
  %140 = vmatmul.bf16.gmra.mxu0 %v98
  %v141 = vpop.f32.mrf.mxu0
  %v142 = vadd.f32 %v37, %v141
  %v143 = vpop.f32.mrf.mxu0
  %v144 = vadd.f32 %v37, %v143
  %145 = vmatmul.bf16.gmra.mxu0 %v101
  %v146 = vpop.f32.mrf.mxu0
  %v147 = vadd.f32 %v37, %v146
  %v148 = vpop.f32.mrf.mxu0
  %v149 = vadd.f32 %v37, %v148
  %150 = vmatmul.bf16.gmra.mxu0 %v104
  %v151 = vpop.f32.mrf.mxu0
  %v152 = vadd.f32 %v37, %v151
  %v153 = vpop.f32.mrf.mxu0
  %v154 = vadd.f32 %v37, %v153
  %155 = vmatmul.bf16.gmra.mxu0 %v107
  %v156 = vpop.f32.mrf.mxu0
  %v157 = vadd.f32 %v37, %v156
  %v158 = vpop.f32.mrf.mxu0
  %v159 = vadd.f32 %v37, %v158
  %160 = vmatmul.bf16.gmra.mxu0 %v110
  %v161 = vpop.f32.mrf.mxu0
  %v162 = vadd.f32 %v37, %v161
  %v163 = vpop.f32.mrf.mxu0
  %v164 = vadd.f32 %v37, %v163
  %165 = vmatmul.bf16.gmra.mxu0 %v113
  %v166 = vpop.f32.mrf.mxu0
  %v167 = vadd.f32 %v37, %v166
  %v168 = vpop.f32.mrf.mxu0
  %v169 = vadd.f32 %v37, %v168
  %170 = vdwg.mxu0
  %v171 = vsub.f32 0.0, %v132
  %v172 = vsub.f32 0.0, %v134
  %v173 = vsub.f32 0.0, %v137
  %v174 = vsub.f32 0.0, %v139
  %v175 = vsub.f32 0.0, %v142
  %v176 = vsub.f32 0.0, %v144
  %v177 = vsub.f32 0.0, %v147
  %v178 = vsub.f32 0.0, %v149
  %v179 = vsub.f32 0.0, %v152
  %v180 = vsub.f32 0.0, %v154
  %v181 = vsub.f32 0.0, %v157
  %v182 = vsub.f32 0.0, %v159
  %v183 = vsub.f32 0.0, %v162
  %v184 = vsub.f32 0.0, %v164
  %v185 = vsub.f32 0.0, %v167
  %v186 = vsub.f32 0.0, %v169
  %v187 = vmul.f32 %v171, 1.442695
  %v188 = vpow.pop %v187
  %v189 = vmul.f32 %v172, 1.442695
  %v190 = vpow.pop %v189
  %v191 = vmul.f32 %v173, 1.442695
  %v192 = vpow.pop %v191
  %v193 = vmul.f32 %v174, 1.442695
  %v194 = vpow.pop %v193
  %v195 = vmul.f32 %v175, 1.442695
  %v196 = vpow.pop %v195
  %v197 = vmul.f32 %v176, 1.442695
  %v198 = vpow.pop %v197
  %v199 = vmul.f32 %v177, 1.442695
  %v200 = vpow.pop %v199
  %v201 = vmul.f32 %v178, 1.442695
  %v202 = vpow.pop %v201
  %v203 = vmul.f32 %v179, 1.442695
  %v204 = vpow.pop %v203
  %v205 = vmul.f32 %v180, 1.442695
  %v206 = vpow.pop %v205
  %v207 = vmul.f32 %v181, 1.442695
  %v208 = vpow.pop %v207
  %v209 = vmul.f32 %v182, 1.442695
  %v210 = vpow.pop %v209
  %v211 = vmul.f32 %v183, 1.442695
  %v212 = vpow.pop %v211
  %v213 = vmul.f32 %v184, 1.442695
  %v214 = vpow.pop %v213
  %v215 = vmul.f32 %v185, 1.442695
  %v216 = vpow.pop %v215
  %v217 = vmul.f32 %v186, 1.442695
  %v218 = vpow.pop %v217
  %v219 = vadd.f32 %v188, 1.0
  %v220 = vadd.f32 %v190, 1.0
  %v221 = vadd.f32 %v192, 1.0
  %v222 = vadd.f32 %v194, 1.0
  %v223 = vadd.f32 %v196, 1.0
  %v224 = vadd.f32 %v198, 1.0
  %v225 = vadd.f32 %v200, 1.0
  %v226 = vadd.f32 %v202, 1.0
  %v227 = vadd.f32 %v204, 1.0
  %v228 = vadd.f32 %v206, 1.0
  %v229 = vadd.f32 %v208, 1.0
  %v230 = vadd.f32 %v210, 1.0
  %v231 = vadd.f32 %v212, 1.0
  %v232 = vadd.f32 %v214, 1.0
  %v233 = vadd.f32 %v216, 1.0
  %v234 = vadd.f32 %v218, 1.0
  %v235 = vrcp.pop %v219
  %v236 = vrcp.pop %v220
  %v237 = vrcp.pop %v221
  %v238 = vrcp.pop %v222
  %v239 = vrcp.pop %v223
  %v240 = vrcp.pop %v224
  %v241 = vrcp.pop %v225
  %v242 = vrcp.pop %v226
  %v243 = vrcp.pop %v227
  %v244 = vrcp.pop %v228
  %v245 = vrcp.pop %v229
  %v246 = vrcp.pop %v230
  %v247 = vrcp.pop %v231
  %v248 = vrcp.pop %v232
  %v249 = vrcp.pop %v233
  %v250 = vrcp.pop %v234
  %v251 = vmul.f32 %v132, %v235
  %v252 = vmul.f32 %v134, %v236
  %v253 = vmul.f32 %v137, %v237
  %v254 = vmul.f32 %v139, %v238
  %v255 = vmul.f32 %v142, %v239
  %v256 = vmul.f32 %v144, %v240
  %v257 = vmul.f32 %v147, %v241
  %v258 = vmul.f32 %v149, %v242
  %v259 = vmul.f32 %v152, %v243
  %v260 = vmul.f32 %v154, %v244
  %v261 = vmul.f32 %v157, %v245
  %v262 = vmul.f32 %v159, %v246
  %v263 = vmul.f32 %v162, %v247
  %v264 = vmul.f32 %v164, %v248
  %v265 = vmul.f32 %v167, %v249
  %v266 = vmul.f32 %v169, %v250
  %v267 = vpack.c.bf16 %v251, %v251
  %v268 = vpack.c.bf16 %v252, %v252
  %v269 = vpack.c.bf16 %v253, %v253
  %v270 = vpack.c.bf16 %v254, %v254
  %v271 = vpack.c.bf16 %v255, %v255
  %v272 = vpack.c.bf16 %v256, %v256
  %v273 = vpack.c.bf16 %v257, %v257
  %v274 = vpack.c.bf16 %v258, %v258
  %v275 = vpack.c.bf16 %v259, %v259
  %v276 = vpack.c.bf16 %v260, %v260
  %v277 = vpack.c.bf16 %v261, %v261
  %v278 = vpack.c.bf16 %v262, %v262
  %v279 = vpack.c.bf16 %v263, %v263
  %v280 = vpack.c.bf16 %v264, %v264
  %v281 = vpack.c.bf16 %v265, %v265
  %v282 = vpack.c.bf16 %v266, %v266
  %283 = vst [vmem:[%s3] sm:$0xf] %v267
  %284 = vst [vmem:[%s3 + $0x4] sm:$0xf] %v268
  %285 = vst [vmem:[%s3 + $0x8] sm:$0xf] %v269
  %286 = vst [vmem:[%s3 + $0xc] sm:$0xf] %v270
  %287 = vst [vmem:[%s3 + $0x10] sm:$0xf] %v271
  %288 = vst [vmem:[%s3 + $0x14] sm:$0xf] %v272
  %289 = vst [vmem:[%s3 + $0x18] sm:$0xf] %v273
  %290 = vst [vmem:[%s3 + $0x1c] sm:$0xf] %v274
  %291 = vst [vmem:[%s3 + $0x20] sm:$0xf] %v275
  %292 = vst [vmem:[%s3 + $0x24] sm:$0xf] %v276
  %293 = vst [vmem:[%s3 + $0x28] sm:$0xf] %v277
  %294 = vst [vmem:[%s3 + $0x2c] sm:$0xf] %v278
  %295 = vst [vmem:[%s3 + $0x30] sm:$0xf] %v279
  %296 = vst [vmem:[%s3 + $0x34] sm:$0xf] %v280
  %297 = vst [vmem:[%s3 + $0x38] sm:$0xf] %v281
  %298 = vst [vmem:[%s3 + $0x3c] sm:$0xf] %v282
  // Predicated region
  $region14: #{diabetic_efficientnet_forward.5} parent=0 // pred_check
    _
  $region15: #{diabetic_efficientnet_forward.5} parent=0 // pred_check_branch
    %300 = sbr.rel (0) target = $region17
  $region16: #{diabetic_efficientnet_forward.5} parent=0 // pred_region
    _
  $region17: #{diabetic_efficientnet_forward.5} parent=0 // pred_fallthru
    _
  // Predicated region
  $region18: #{diabetic_efficientnet_forward.5} parent=0 // pred_check
    _
  $region19: #{diabetic_efficientnet_forward.5} parent=0 // pred_check_branch
    %302 = sbr.rel (0) target = $region21
  $region20: #{diabetic_efficientnet_forward.5} parent=0 // pred_region
    _
  $region21: #{diabetic_efficientnet_forward.5} parent=0 // pred_fallthru
    _

// kernel: diabetic_efficientnet_forward.7
$region0: #{diabetic_efficientnet_forward.7}
  #allocation0 [shape = 'u32[]', space=smem, size = 0x4, offset = 0x4, fixed_abs, tag = 'smem constant byte address 0x4 - core index']
  #allocation1 [shape = 'u32[72,128]{1,0:T(1,128)}', space=vmem, size = 0x9000, scoped, tag = 'internal scratch']
  %s0 = inlined_call_operand.vmem [shape: bf16[2,10,10,128], index: 0, kind: input, shape index: {}]
  %s1 = inlined_call_operand.vmem [shape: f32[3,3,128], index: 1, kind: input, shape index: {}]
  %s2 = inlined_call_operand.vmem [shape: f32[1,128], index: 2, kind: input, shape index: {}]
  %s3 = inlined_call_operand.vmem [shape: bf16[2,8,8,128], index: 3, kind: output, shape index: {0}]
  %s4 = inlined_call_operand.vmem [shape: f32[2,1,128], index: 4, kind: output, shape index: {1}]
  %5 = xla_tuple %s3, %s4
  %s6 = sld [smem:[#allocation0]]
  $region53: #{diabetic_efficientnet_forward.7} parent=0
    _
  %s8 = ssub.s32 1, %s6
  %s9 = scalar_select 0, %s8, %s6
  loop: start=0, step=1, limit=4
  $region2: #{diabetic_efficientnet_forward.7} parent=0 // loop_pre_header
    _
  $region3: #{diabetic_efficientnet_forward.7} parent=0 // loop_header
    %s11 = sphi 0, %s15
    %p12 = scmp.ge.s32.totalorder %s11, 4
    %s21 = sphi 0, %s23
    %s24 = sphi 0, %s21
    %s25 = sphi 0, %s24
    %s41 = sphi 0, %s25
    %s45 = sphi 0, %s45
    %s47 = sphi 0, %s45
    %s48 = sphi 0, %s47
    %s62 = sphi 0, %s48
    %s66 = sphi 0, %s66
    %s68 = sphi 0, %s66
    %s69 = sphi 0, %s68
    %s83 = sphi 0, %s69
    %s89 = sphi 0, %s91
    %s92 = sphi 0, %s89
    %s93 = sphi 0, %s92
    %s109 = sphi 0, %s93
    %s115 = sphi 0, %s117
    %s118 = sphi 0, %s115
    %s119 = sphi 0, %s118
    %s135 = sphi 0, %s119
  $region4: #{diabetic_efficientnet_forward.7} parent=0 // loop_header_branch
    %14 = sbr.rel (%p12) target = $region8
  $region5: #{diabetic_efficientnet_forward.7} parent=0 // loop_body
    %s16 = ssub.s32 %s11, 1
    %s17 = ssub.s32 %s11, 2
    %s18 = sadd.s32 %s11, 1
    %s19 = ssub.s32 %s11, %s18
    %p20 = scmp.eq.s32.totalorder %s19, 0
    %s22 = sadd.s32 %s21, 1
    %s23 = scalar_select %p20, %s21, %s22
    %p26 = pneg %p20
    %p27 = scmp.eq.s32.totalorder %s11, 1
    %p28 = por %p26, %p27
    %p29 = scmp.ne.s32.totalorder %s21, %s24
    %p30 = scmp.eq.s32.totalorder %s11, 0
    %p31 = por %p29, %p30
    %p32 = scmp.ne.s32.totalorder %s21, %s24
    %p33 = scmp.eq.s32.totalorder %s16, 1
    %p34 = por %p32, %p33
    %p35 = scmp.ne.s32.totalorder %s24, %s25
    %p36 = scmp.eq.s32.totalorder %s16, 0
    %p37 = por %p35, %p36
    %p38 = scmp.ne.s32.totalorder %s24, %s25
    %p39 = scmp.eq.s32.totalorder %s17, 1
    %p40 = por %p38, %p39
    %p42 = scmp.ne.s32.totalorder %s25, %s41
    %p43 = scmp.eq.s32.totalorder %s17, 0
    %p44 = por %p42, %p43
    %s46 = sadd.s32 %s45, 1
    %p49 = scmp.eq.s32.totalorder %s11, 1
    %p50 = scmp.ne.s32.totalorder %s45, %s47
    %p51 = scmp.eq.s32.totalorder %s11, 0
    %p52 = por %p50, %p51
    %p53 = scmp.ne.s32.totalorder %s45, %s47
    %p54 = scmp.eq.s32.totalorder %s16, 1
    %p55 = por %p53, %p54
    %p56 = scmp.ne.s32.totalorder %s47, %s48
    %p57 = scmp.eq.s32.totalorder %s16, 0
    %p58 = por %p56, %p57
    %p59 = scmp.ne.s32.totalorder %s47, %s48
    %p60 = scmp.eq.s32.totalorder %s17, 1
    %p61 = por %p59, %p60
    %p63 = scmp.ne.s32.totalorder %s48, %s62
    %p64 = scmp.eq.s32.totalorder %s17, 0
    %p65 = por %p63, %p64
    %s67 = sadd.s32 %s66, 1
    %p70 = scmp.eq.s32.totalorder %s11, 1
    %p71 = scmp.ne.s32.totalorder %s66, %s68
    %p72 = scmp.eq.s32.totalorder %s11, 0
    %p73 = por %p71, %p72
    %p74 = scmp.ne.s32.totalorder %s66, %s68
    %p75 = scmp.eq.s32.totalorder %s16, 1
    %p76 = por %p74, %p75
    %p77 = scmp.ne.s32.totalorder %s68, %s69
    %p78 = scmp.eq.s32.totalorder %s16, 0
    %p79 = por %p77, %p78
    %p80 = scmp.ne.s32.totalorder %s68, %s69
    %p81 = scmp.eq.s32.totalorder %s17, 1
    %p82 = por %p80, %p81
    %p84 = scmp.ne.s32.totalorder %s69, %s83
    %p85 = scmp.eq.s32.totalorder %s17, 0
    %p86 = por %p84, %p85
    %s87 = ssub.s32 %s11, %s18
    %p88 = scmp.eq.s32.totalorder %s87, 0
    %s90 = sadd.s32 %s89, 1
    %s91 = scalar_select %p88, %s89, %s90
    %p94 = pneg %p88
    %p95 = scmp.eq.s32.totalorder %s11, 1
    %p96 = por %p94, %p95
    %p97 = scmp.ne.s32.totalorder %s89, %s92
    %p98 = scmp.eq.s32.totalorder %s11, 0
    %p99 = por %p97, %p98
    %p100 = scmp.ne.s32.totalorder %s89, %s92
    %p101 = scmp.eq.s32.totalorder %s16, 1
    %p102 = por %p100, %p101
    %p103 = scmp.ne.s32.totalorder %s92, %s93
    %p104 = scmp.eq.s32.totalorder %s16, 0
    %p105 = por %p103, %p104
    %p106 = scmp.ne.s32.totalorder %s92, %s93
    %p107 = scmp.eq.s32.totalorder %s17, 1
    %p108 = por %p106, %p107
    %p110 = scmp.ne.s32.totalorder %s93, %s109
    %p111 = scmp.eq.s32.totalorder %s17, 0
    %p112 = por %p110, %p111
    %s113 = ssub.s32 %s11, %s18
    %p114 = scmp.eq.s32.totalorder %s113, 0
    %s116 = sadd.s32 %s115, 1
    %s117 = scalar_select %p114, %s115, %s116
    %p120 = pneg %p114
    %p121 = scmp.eq.s32.totalorder %s11, 1
    %p122 = por %p120, %p121
    %p123 = scmp.ne.s32.totalorder %s115, %s118
    %p124 = scmp.eq.s32.totalorder %s11, 0
    %p125 = por %p123, %p124
    %p126 = scmp.ne.s32.totalorder %s115, %s118
    %p127 = scmp.eq.s32.totalorder %s16, 1
    %p128 = por %p126, %p127
    %p129 = scmp.ne.s32.totalorder %s118, %s119
    %p130 = scmp.eq.s32.totalorder %s16, 0
    %p131 = por %p129, %p130
    %p132 = scmp.ne.s32.totalorder %s118, %s119
    %p133 = scmp.eq.s32.totalorder %s17, 1
    %p134 = por %p132, %p133
    %p136 = scmp.ne.s32.totalorder %s119, %s135
    %p137 = scmp.eq.s32.totalorder %s17, 0
    %p138 = por %p136, %p137
    %p139 = scmp.le.s32.totalorder 1, %s11
    %p140 = scmp.lt.s32.totalorder %s11, 3
    %p141 = pnand %p139, %p140
    %p142 = pneg %p141
    // Predicated region
    $region9: #{diabetic_efficientnet_forward.7} parent=5 // pred_check
      _
    $region10: #{diabetic_efficientnet_forward.7} parent=5 // pred_check_branch
      %144 = sbr.rel (%p141) target = $region12
    $region11: #{diabetic_efficientnet_forward.7} parent=5 // pred_region
      %s145 = ssub.s32 %s11, 1
      // Predicated region
      $region13: #{diabetic_efficientnet_forward.7} parent=11 // pred_check
        %p146 = pneg %p58
      $region14: #{diabetic_efficientnet_forward.7} parent=11 // pred_check_branch
        %148 = sbr.rel (%p146) target = $region16
      $region15: #{diabetic_efficientnet_forward.7} parent=11 // pred_region
        _
      $region16: #{diabetic_efficientnet_forward.7} parent=11 // pred_fallthru
        _
      // Predicated region
      $region17: #{diabetic_efficientnet_forward.7} parent=11 // pred_check
        %p149 = pneg %p79
      $region18: #{diabetic_efficientnet_forward.7} parent=11 // pred_check_branch
        %151 = sbr.rel (%p149) target = $region20
      $region19: #{diabetic_efficientnet_forward.7} parent=11 // pred_region
        _
      $region20: #{diabetic_efficientnet_forward.7} parent=11 // pred_fallthru
        _
    $region12: #{diabetic_efficientnet_forward.7} parent=5 // pred_fallthru
      _
    %p152 = scmp.lt.s32.totalorder %s11, 2
    // Predicated region
    $region21: #{diabetic_efficientnet_forward.7} parent=5 // pred_check
      %p153 = pneg %p152
    $region22: #{diabetic_efficientnet_forward.7} parent=5 // pred_check_branch
      %155 = sbr.rel (%p153) target = $region24
    $region23: #{diabetic_efficientnet_forward.7} parent=5 // pred_region
      // Predicated region
      $region25: #{diabetic_efficientnet_forward.7} parent=23 // pred_check
        %p156 = pneg %p31
      $region26: #{diabetic_efficientnet_forward.7} parent=23 // pred_check_branch
        %158 = sbr.rel (%p156) target = $region28
      $region27: #{diabetic_efficientnet_forward.7} parent=23 // pred_region
        %p159 = scmp.lt.s32.totalorder %s11, 1
        %s160 = scalar_select %p159, %s11, 1
        %s161 = smul.addr %s160, 20
        %s162 = smul.addr %s161, 4
        %s163 = scalar_lea.vmem %s0, %s162
      $region28: #{diabetic_efficientnet_forward.7} parent=23 // pred_fallthru
        _
    $region24: #{diabetic_efficientnet_forward.7} parent=5 // pred_fallthru
      _
    %p164 = scmp.le.s32.totalorder 1, %s11
    %p165 = scmp.lt.s32.totalorder %s11, 3
    %p166 = pnand %p164, %p165
    %p167 = pneg %p166
    // Predicated region
    $region29: #{diabetic_efficientnet_forward.7} parent=5 // pred_check
      _
    $region30: #{diabetic_efficientnet_forward.7} parent=5 // pred_check_branch
      %169 = sbr.rel (%p166) target = $region32
    $region31: #{diabetic_efficientnet_forward.7} parent=5 // pred_region
      %s170 = ssub.s32 %s11, 1
      %p171 = scmp.lt.s32.totalorder %s16, 1
      %s172 = scalar_select %p171, %s16, 1
      %s173 = smul.addr %s172, 20
      %s174 = smul.addr %s173, 4
      %s175 = scalar_lea.vmem %s0, %s174
      %p176 = pneg %p37
      %p177 = pneg %p34
      %p178 = pneg %p58
      %p179 = pneg %p55
      %p180 = pneg %p79
      %p181 = pneg %p76
      %p182 = pneg %p105
      %p183 = pneg %p102
      %p184 = scmp.lt.s32.totalorder %s16, 1
      %s185 = scalar_select %p184, %s16, 1
      %s186 = smul.addr %s185, 8
      %s187 = smul.addr %s186, 4
      %s188 = scalar_lea.vmem %s3, %s187
      %p189 = pneg %p131
      %p190 = pneg %p128
      %p191 = scmp.lt.s32.totalorder %s16, 1
      %s192 = scalar_select %p191, %s16, 1
      %s193 = scalar_lea.vmem %s4, %s192
      %p194 = scmp.lt.s32.totalorder %s16, 1
      %s195 = scalar_select %p194, %s16, 1
      %s196 = smul.addr %s195, 20
      %s197 = smul.addr %s196, 4
      %s198 = scalar_lea.vmem %s0, %s197
      %p199 = scmp.lt.s32.totalorder %s16, 1
      %s200 = scalar_select %p199, %s16, 1
      %s201 = smul.addr %s200, 8
      %s202 = smul.addr %s201, 4
      %s203 = scalar_lea.vmem %s3, %s202
      %p204 = scmp.lt.s32.totalorder %s16, 1
      %s205 = scalar_select %p204, %s16, 1
      %s206 = scalar_lea.vmem %s4, %s205
      %v207 = vld [vmem:[%s198] sm:$0xf]
      %v208 = vld [vmem:[%s198 + $0x4] sm:$0x1]
      %v209 = vld [vmem:[%s198 + $0x8] sm:$0xf]
      %v210 = vld [vmem:[%s198 + $0xc] sm:$0x1]
      %v211 = vld [vmem:[%s198 + $0x10] sm:$0xf]
      %v212 = vld [vmem:[%s198 + $0x14] sm:$0x1]
      %v213 = vld [vmem:[%s198 + $0x18] sm:$0xf]
      %v214 = vld [vmem:[%s198 + $0x1c] sm:$0x1]
      %v215 = vld [vmem:[%s198 + $0x20] sm:$0xf]
      %v216 = vld [vmem:[%s198 + $0x24] sm:$0x1]
      %v217 = vld [vmem:[%s198 + $0x28] sm:$0xf]
      %v218 = vld [vmem:[%s198 + $0x2c] sm:$0x1]
      %v219 = vld [vmem:[%s198 + $0x30] sm:$0xf]
      %v220 = vld [vmem:[%s198 + $0x34] sm:$0x1]
      %v221 = vld [vmem:[%s198 + $0x38] sm:$0xf]
      %v222 = vld [vmem:[%s198 + $0x3c] sm:$0x1]
      %v223 = vld [vmem:[%s198 + $0x40] sm:$0xf]
      %v224 = vld [vmem:[%s198 + $0x44] sm:$0x1]
      %v225 = vld [vmem:[%s198 + $0x48] sm:$0xf]
      %v226 = vld [vmem:[%s198 + $0x4c] sm:$0x1]
      %v227 = vunpack.c.l.bf16 %v207
      %v228 = vunpack.c.l.bf16 %v208
      %v229 = vunpack.c.l.bf16 %v209
      %v230 = vunpack.c.l.bf16 %v210
      %v231 = vunpack.c.l.bf16 %v211
      %v232 = vunpack.c.l.bf16 %v212
      %v233 = vunpack.c.l.bf16 %v213
      %v234 = vunpack.c.l.bf16 %v214
      %v235 = vunpack.c.l.bf16 %v215
      %v236 = vunpack.c.l.bf16 %v216
      %v237 = vunpack.c.l.bf16 %v217
      %v238 = vunpack.c.l.bf16 %v218
      %v239 = vunpack.c.l.bf16 %v219
      %v240 = vunpack.c.l.bf16 %v220
      %v241 = vunpack.c.l.bf16 %v221
      %v242 = vunpack.c.l.bf16 %v222
      %v243 = vunpack.c.l.bf16 %v223
      %v244 = vunpack.c.l.bf16 %v224
      %v245 = vunpack.c.l.bf16 %v225
      %v246 = vunpack.c.l.bf16 %v226
      %v247 = vld [vmem:[%s1] sm:$0x7]
      %v248 = vld [vmem:[%s1 + $0x4] sm:$0x7]
      %v249 = vld [vmem:[%s1 + $0x8] sm:$0x7]
      %v250 = vperm.slane %v247, 0
      %v251 = vmul.f32 %v227, %v250
      %v252 = vmul.f32 %v229, %v250
      %v253 = vmul.f32 %v231, %v250
      %v254 = vmul.f32 %v233, %v250
      %v255 = vmul.f32 %v235, %v250
      %v256 = vmul.f32 %v237, %v250
      %v257 = vmul.f32 %v239, %v250
      %v258 = vmul.f32 %v241, %v250
      %v259 = vadd.f32 %v251, 0.0
      %v260 = vadd.f32 %v252, 0.0
      %v261 = vadd.f32 %v253, 0.0
      %v262 = vadd.f32 %v254, 0.0
      %v263 = vadd.f32 %v255, 0.0
      %v264 = vadd.f32 %v256, 0.0
      %v265 = vadd.f32 %v257, 0.0
      %v266 = vadd.f32 %v258, 0.0
      %v267 = vperm.slane %v247, 1
      %v268 = vmul.f32 %v227, %v267
      %v269 = vmul.f32 %v228, %v267
      %v270 = vmul.f32 %v229, %v267
      %v271 = vmul.f32 %v230, %v267
      %v272 = vmul.f32 %v231, %v267
      %v273 = vmul.f32 %v232, %v267
      %v274 = vmul.f32 %v233, %v267
      %v275 = vmul.f32 %v234, %v267
      %v276 = vmul.f32 %v235, %v267
      %v277 = vmul.f32 %v236, %v267
      %v278 = vmul.f32 %v237, %v267
      %v279 = vmul.f32 %v238, %v267
      %v280 = vmul.f32 %v239, %v267
      %v281 = vmul.f32 %v240, %v267
      %v282 = vmul.f32 %v241, %v267
      %v283 = vmul.f32 %v242, %v267
      %vm300 = vcmask 1046528
      %v301 = vrot.slane %v268, 1
      %v302 = vrot.slane %v269, 1
      %v303 = vsel %vm300, %v301, %v302
      %v304 = vrot.slane %v270, 1
      %v305 = vrot.slane %v271, 1
      %v306 = vsel %vm300, %v304, %v305
      %v307 = vrot.slane %v272, 1
      %v308 = vrot.slane %v273, 1
      %v309 = vsel %vm300, %v307, %v308
      %v310 = vrot.slane %v274, 1
      %v311 = vrot.slane %v275, 1
      %v312 = vsel %vm300, %v310, %v311
      %v313 = vrot.slane %v276, 1
      %v314 = vrot.slane %v277, 1
      %v315 = vsel %vm300, %v313, %v314
      %v316 = vrot.slane %v278, 1
      %v317 = vrot.slane %v279, 1
      %v318 = vsel %vm300, %v316, %v317
      %v319 = vrot.slane %v280, 1
      %v320 = vrot.slane %v281, 1
      %v321 = vsel %vm300, %v319, %v320
      %v322 = vrot.slane %v282, 1
      %v323 = vrot.slane %v283, 1
      %v324 = vsel %vm300, %v322, %v323
      %v333 = vadd.f32 %v259, %v303
      %v334 = vadd.f32 %v260, %v306
      %v335 = vadd.f32 %v261, %v309
      %v336 = vadd.f32 %v262, %v312
      %v337 = vadd.f32 %v263, %v315
      %v338 = vadd.f32 %v264, %v318
      %v339 = vadd.f32 %v265, %v321
      %v340 = vadd.f32 %v266, %v324
      %v341 = vperm.slane %v247, 2
      %v342 = vmul.f32 %v227, %v341
      %v343 = vmul.f32 %v228, %v341
      %v344 = vmul.f32 %v229, %v341
      %v345 = vmul.f32 %v230, %v341
      %v346 = vmul.f32 %v231, %v341
      %v347 = vmul.f32 %v232, %v341
      %v348 = vmul.f32 %v233, %v341
      %v349 = vmul.f32 %v234, %v341
      %v350 = vmul.f32 %v235, %v341
      %v351 = vmul.f32 %v236, %v341
      %v352 = vmul.f32 %v237, %v341
      %v353 = vmul.f32 %v238, %v341
      %v354 = vmul.f32 %v239, %v341
      %v355 = vmul.f32 %v240, %v341
      %v356 = vmul.f32 %v241, %v341
      %v357 = vmul.f32 %v242, %v341
      %vm374 = vcmask 1045504
      %v375 = vrot.slane %v342, 2
      %v376 = vrot.slane %v343, 2
      %v377 = vsel %vm374, %v375, %v376
      %v378 = vrot.slane %v344, 2
      %v379 = vrot.slane %v345, 2
      %v380 = vsel %vm374, %v378, %v379
      %v381 = vrot.slane %v346, 2
      %v382 = vrot.slane %v347, 2
      %v383 = vsel %vm374, %v381, %v382
      %v384 = vrot.slane %v348, 2
      %v385 = vrot.slane %v349, 2
      %v386 = vsel %vm374, %v384, %v385
      %v387 = vrot.slane %v350, 2
      %v388 = vrot.slane %v351, 2
      %v389 = vsel %vm374, %v387, %v388
      %v390 = vrot.slane %v352, 2
      %v391 = vrot.slane %v353, 2
      %v392 = vsel %vm374, %v390, %v391
      %v393 = vrot.slane %v354, 2
      %v394 = vrot.slane %v355, 2
      %v395 = vsel %vm374, %v393, %v394
      %v396 = vrot.slane %v356, 2
      %v397 = vrot.slane %v357, 2
      %v398 = vsel %vm374, %v396, %v397
      %v407 = vadd.f32 %v333, %v377
      %v408 = vadd.f32 %v334, %v380
      %v409 = vadd.f32 %v335, %v383
      %v410 = vadd.f32 %v336, %v386
      %v411 = vadd.f32 %v337, %v389
      %v412 = vadd.f32 %v338, %v392
      %v413 = vadd.f32 %v339, %v395
      %v414 = vadd.f32 %v340, %v398
      %v415 = vperm.slane %v248, 0
      %v416 = vmul.f32 %v229, %v415
      %v417 = vmul.f32 %v231, %v415
      %v418 = vmul.f32 %v233, %v415
      %v419 = vmul.f32 %v235, %v415
      %v420 = vmul.f32 %v237, %v415
      %v421 = vmul.f32 %v239, %v415
      %v422 = vmul.f32 %v241, %v415
      %v423 = vmul.f32 %v243, %v415
      %v424 = vadd.f32 %v407, %v416
      %v425 = vadd.f32 %v408, %v417
      %v426 = vadd.f32 %v409, %v418
      %v427 = vadd.f32 %v410, %v419
      %v428 = vadd.f32 %v411, %v420
      %v429 = vadd.f32 %v412, %v421
      %v430 = vadd.f32 %v413, %v422
      %v431 = vadd.f32 %v414, %v423
      %v432 = vperm.slane %v248, 1
      %v433 = vmul.f32 %v229, %v432
      %v434 = vmul.f32 %v230, %v432
      %v435 = vmul.f32 %v231, %v432
      %v436 = vmul.f32 %v232, %v432
      %v437 = vmul.f32 %v233, %v432
      %v438 = vmul.f32 %v234, %v432
      %v439 = vmul.f32 %v235, %v432
      %v440 = vmul.f32 %v236, %v432
      %v441 = vmul.f32 %v237, %v432
      %v442 = vmul.f32 %v238, %v432
      %v443 = vmul.f32 %v239, %v432
      %v444 = vmul.f32 %v240, %v432
      %v445 = vmul.f32 %v241, %v432
      %v446 = vmul.f32 %v242, %v432
      %v447 = vmul.f32 %v243, %v432
      %v448 = vmul.f32 %v244, %v432
      %v465 = vrot.slane %v433, 1
      %v466 = vrot.slane %v434, 1
      %v467 = vsel %vm300, %v465, %v466
      %v468 = vrot.slane %v435, 1
      %v469 = vrot.slane %v436, 1
      %v470 = vsel %vm300, %v468, %v469
      %v471 = vrot.slane %v437, 1
      %v472 = vrot.slane %v438, 1
      %v473 = vsel %vm300, %v471, %v472
      %v474 = vrot.slane %v439, 1
      %v475 = vrot.slane %v440, 1
      %v476 = vsel %vm300, %v474, %v475
      %v477 = vrot.slane %v441, 1
      %v478 = vrot.slane %v442, 1
      %v479 = vsel %vm300, %v477, %v478
      %v480 = vrot.slane %v443, 1
      %v481 = vrot.slane %v444, 1
      %v482 = vsel %vm300, %v480, %v481
      %v483 = vrot.slane %v445, 1
      %v484 = vrot.slane %v446, 1
      %v485 = vsel %vm300, %v483, %v484
      %v486 = vrot.slane %v447, 1
      %v487 = vrot.slane %v448, 1
      %v488 = vsel %vm300, %v486, %v487
      %v497 = vadd.f32 %v424, %v467
      %v498 = vadd.f32 %v425, %v470
      %v499 = vadd.f32 %v426, %v473
      %v500 = vadd.f32 %v427, %v476
      %v501 = vadd.f32 %v428, %v479
      %v502 = vadd.f32 %v429, %v482
      %v503 = vadd.f32 %v430, %v485
      %v504 = vadd.f32 %v431, %v488
      %v505 = vperm.slane %v248, 2
      %v506 = vmul.f32 %v229, %v505
      %v507 = vmul.f32 %v230, %v505
      %v508 = vmul.f32 %v231, %v505
      %v509 = vmul.f32 %v232, %v505
      %v510 = vmul.f32 %v233, %v505
      %v511 = vmul.f32 %v234, %v505
      %v512 = vmul.f32 %v235, %v505
      %v513 = vmul.f32 %v236, %v505
      %v514 = vmul.f32 %v237, %v505
      %v515 = vmul.f32 %v238, %v505
      %v516 = vmul.f32 %v239, %v505
      %v517 = vmul.f32 %v240, %v505
      %v518 = vmul.f32 %v241, %v505
      %v519 = vmul.f32 %v242, %v505
      %v520 = vmul.f32 %v243, %v505
      %v521 = vmul.f32 %v244, %v505
      %v538 = vrot.slane %v506, 2
      %v539 = vrot.slane %v507, 2
      %v540 = vsel %vm374, %v538, %v539
      %v541 = vrot.slane %v508, 2
      %v542 = vrot.slane %v509, 2
      %v543 = vsel %vm374, %v541, %v542
      %v544 = vrot.slane %v510, 2
      %v545 = vrot.slane %v511, 2
      %v546 = vsel %vm374, %v544, %v545
      %v547 = vrot.slane %v512, 2
      %v548 = vrot.slane %v513, 2
      %v549 = vsel %vm374, %v547, %v548
      %v550 = vrot.slane %v514, 2
      %v551 = vrot.slane %v515, 2
      %v552 = vsel %vm374, %v550, %v551
      %v553 = vrot.slane %v516, 2
      %v554 = vrot.slane %v517, 2
      %v555 = vsel %vm374, %v553, %v554
      %v556 = vrot.slane %v518, 2
      %v557 = vrot.slane %v519, 2
      %v558 = vsel %vm374, %v556, %v557
      %v559 = vrot.slane %v520, 2
      %v560 = vrot.slane %v521, 2
      %v561 = vsel %vm374, %v559, %v560
      %v570 = vadd.f32 %v497, %v540
      %v571 = vadd.f32 %v498, %v543
      %v572 = vadd.f32 %v499, %v546
      %v573 = vadd.f32 %v500, %v549
      %v574 = vadd.f32 %v501, %v552
      %v575 = vadd.f32 %v502, %v555
      %v576 = vadd.f32 %v503, %v558
      %v577 = vadd.f32 %v504, %v561
      %v578 = vperm.slane %v249, 0
      %v579 = vmul.f32 %v231, %v578
      %v580 = vmul.f32 %v233, %v578
      %v581 = vmul.f32 %v235, %v578
      %v582 = vmul.f32 %v237, %v578
      %v583 = vmul.f32 %v239, %v578
      %v584 = vmul.f32 %v241, %v578
      %v585 = vmul.f32 %v243, %v578
      %v586 = vmul.f32 %v245, %v578
      %v587 = vadd.f32 %v570, %v579
      %v588 = vadd.f32 %v571, %v580
      %v589 = vadd.f32 %v572, %v581
      %v590 = vadd.f32 %v573, %v582
      %v591 = vadd.f32 %v574, %v583
      %v592 = vadd.f32 %v575, %v584
      %v593 = vadd.f32 %v576, %v585
      %v594 = vadd.f32 %v577, %v586
      %v595 = vperm.slane %v249, 1
      %v596 = vmul.f32 %v231, %v595
      %v597 = vmul.f32 %v232, %v595
      %v598 = vmul.f32 %v233, %v595
      %v599 = vmul.f32 %v234, %v595
      %v600 = vmul.f32 %v235, %v595
      %v601 = vmul.f32 %v236, %v595
      %v602 = vmul.f32 %v237, %v595
      %v603 = vmul.f32 %v238, %v595
      %v604 = vmul.f32 %v239, %v595
      %v605 = vmul.f32 %v240, %v595
      %v606 = vmul.f32 %v241, %v595
      %v607 = vmul.f32 %v242, %v595
      %v608 = vmul.f32 %v243, %v595
      %v609 = vmul.f32 %v244, %v595
      %v610 = vmul.f32 %v245, %v595
      %v611 = vmul.f32 %v246, %v595
      %v628 = vrot.slane %v596, 1
      %v629 = vrot.slane %v597, 1
      %v630 = vsel %vm300, %v628, %v629
      %v631 = vrot.slane %v598, 1
      %v632 = vrot.slane %v599, 1
      %v633 = vsel %vm300, %v631, %v632
      %v634 = vrot.slane %v600, 1
      %v635 = vrot.slane %v601, 1
      %v636 = vsel %vm300, %v634, %v635
      %v637 = vrot.slane %v602, 1
      %v638 = vrot.slane %v603, 1
      %v639 = vsel %vm300, %v637, %v638
      %v640 = vrot.slane %v604, 1
      %v641 = vrot.slane %v605, 1
      %v642 = vsel %vm300, %v640, %v641
      %v643 = vrot.slane %v606, 1
      %v644 = vrot.slane %v607, 1
      %v645 = vsel %vm300, %v643, %v644
      %v646 = vrot.slane %v608, 1
      %v647 = vrot.slane %v609, 1
      %v648 = vsel %vm300, %v646, %v647
      %v649 = vrot.slane %v610, 1
      %v650 = vrot.slane %v611, 1
      %v651 = vsel %vm300, %v649, %v650
      %v660 = vadd.f32 %v587, %v630
      %v661 = vadd.f32 %v588, %v633
      %v662 = vadd.f32 %v589, %v636
      %v663 = vadd.f32 %v590, %v639
      %v664 = vadd.f32 %v591, %v642
      %v665 = vadd.f32 %v592, %v645
      %v666 = vadd.f32 %v593, %v648
      %v667 = vadd.f32 %v594, %v651
      %v668 = vperm.slane %v249, 2
      %v669 = vmul.f32 %v231, %v668
      %v670 = vmul.f32 %v232, %v668
      %v671 = vmul.f32 %v233, %v668
      %v672 = vmul.f32 %v234, %v668
      %v673 = vmul.f32 %v235, %v668
      %v674 = vmul.f32 %v236, %v668
      %v675 = vmul.f32 %v237, %v668
      %v676 = vmul.f32 %v238, %v668
      %v677 = vmul.f32 %v239, %v668
      %v678 = vmul.f32 %v240, %v668
      %v679 = vmul.f32 %v241, %v668
      %v680 = vmul.f32 %v242, %v668
      %v681 = vmul.f32 %v243, %v668
      %v682 = vmul.f32 %v244, %v668
      %v683 = vmul.f32 %v245, %v668
      %v684 = vmul.f32 %v246, %v668
      %v701 = vrot.slane %v669, 2
      %v702 = vrot.slane %v670, 2
      %v703 = vsel %vm374, %v701, %v702
      %v704 = vrot.slane %v671, 2
      %v705 = vrot.slane %v672, 2
      %v706 = vsel %vm374, %v704, %v705
      %v707 = vrot.slane %v673, 2
      %v708 = vrot.slane %v674, 2
      %v709 = vsel %vm374, %v707, %v708
      %v710 = vrot.slane %v675, 2
      %v711 = vrot.slane %v676, 2
      %v712 = vsel %vm374, %v710, %v711
      %v713 = vrot.slane %v677, 2
      %v714 = vrot.slane %v678, 2
      %v715 = vsel %vm374, %v713, %v714
      %v716 = vrot.slane %v679, 2
      %v717 = vrot.slane %v680, 2
      %v718 = vsel %vm374, %v716, %v717
      %v719 = vrot.slane %v681, 2
      %v720 = vrot.slane %v682, 2
      %v721 = vsel %vm374, %v719, %v720
      %v722 = vrot.slane %v683, 2
      %v723 = vrot.slane %v684, 2
      %v724 = vsel %vm374, %v722, %v723
      %v733 = vadd.f32 %v660, %v703
      %v734 = vadd.f32 %v661, %v706
      %v735 = vadd.f32 %v662, %v709
      %v736 = vadd.f32 %v663, %v712
      %v737 = vadd.f32 %v664, %v715
      %v738 = vadd.f32 %v665, %v718
      %v739 = vadd.f32 %v666, %v721
      %v740 = vadd.f32 %v667, %v724
      %v741 = vld [vmem:[%s2] sm:$0x1]
      %v743 = vperm.slane %v741, 0
      %v745 = vadd.f32 %v733, %v743
      %v746 = vadd.f32 %v734, %v743
      %v747 = vadd.f32 %v735, %v743
      %v748 = vadd.f32 %v736, %v743
      %v749 = vadd.f32 %v737, %v743
      %v750 = vadd.f32 %v738, %v743
      %v751 = vadd.f32 %v739, %v743
      %v752 = vadd.f32 %v740, %v743
      %v753 = vsub.f32 0.0, %v745
      %v754 = vsub.f32 0.0, %v746
      %v755 = vsub.f32 0.0, %v747
      %v756 = vsub.f32 0.0, %v748
      %v757 = vsub.f32 0.0, %v749
      %v758 = vsub.f32 0.0, %v750
      %v759 = vsub.f32 0.0, %v751
      %v760 = vsub.f32 0.0, %v752
      %v761 = vmul.f32 %v753, 1.442695
      %v762 = vpow.pop %v761
      %v763 = vmul.f32 %v754, 1.442695
      %v764 = vpow.pop %v763
      %v765 = vmul.f32 %v755, 1.442695
      %v766 = vpow.pop %v765
      %v767 = vmul.f32 %v756, 1.442695
      %v768 = vpow.pop %v767
      %v769 = vmul.f32 %v757, 1.442695
      %v770 = vpow.pop %v769
      %v771 = vmul.f32 %v758, 1.442695
      %v772 = vpow.pop %v771
      %v773 = vmul.f32 %v759, 1.442695
      %v774 = vpow.pop %v773
      %v775 = vmul.f32 %v760, 1.442695
      %v776 = vpow.pop %v775
      %v777 = vadd.f32 %v762, 1.0
      %v778 = vadd.f32 %v764, 1.0
      %v779 = vadd.f32 %v766, 1.0
      %v780 = vadd.f32 %v768, 1.0
      %v781 = vadd.f32 %v770, 1.0
      %v782 = vadd.f32 %v772, 1.0
      %v783 = vadd.f32 %v774, 1.0
      %v784 = vadd.f32 %v776, 1.0
      %v785 = vrcp.pop %v777
      %v786 = vrcp.pop %v778
      %v787 = vrcp.pop %v779
      %v788 = vrcp.pop %v780
      %v789 = vrcp.pop %v781
      %v790 = vrcp.pop %v782
      %v791 = vrcp.pop %v783
      %v792 = vrcp.pop %v784
      %v793 = vmul.f32 %v745, %v785
      %v794 = vmul.f32 %v746, %v786
      %v795 = vmul.f32 %v747, %v787
      %v796 = vmul.f32 %v748, %v788
      %v797 = vmul.f32 %v749, %v789
      %v798 = vmul.f32 %v750, %v790
      %v799 = vmul.f32 %v751, %v791
      %v800 = vmul.f32 %v752, %v792
      %v801 = vpack.c.bf16 %v793, %v793
      %v802 = vpack.c.bf16 %v794, %v794
      %v803 = vpack.c.bf16 %v795, %v795
      %v804 = vpack.c.bf16 %v796, %v796
      %v805 = vpack.c.bf16 %v797, %v797
      %v806 = vpack.c.bf16 %v798, %v798
      %v807 = vpack.c.bf16 %v799, %v799
      %v808 = vpack.c.bf16 %v800, %v800
      %809 = vst [vmem:[%s203] sm:$0xf] %v801
      %810 = vst [vmem:[%s203 + $0x4] sm:$0xf] %v802
      %811 = vst [vmem:[%s203 + $0x8] sm:$0xf] %v803
      %812 = vst [vmem:[%s203 + $0xc] sm:$0xf] %v804
      %813 = vst [vmem:[%s203 + $0x10] sm:$0xf] %v805
      %814 = vst [vmem:[%s203 + $0x14] sm:$0xf] %v806
      %815 = vst [vmem:[%s203 + $0x18] sm:$0xf] %v807
      %816 = vst [vmem:[%s203 + $0x1c] sm:$0xf] %v808
      %v817 = vadd.f32 %v793, %v794
      %v818 = vadd.f32 %v817, %v795
      %v819 = vadd.f32 %v818, %v796
      %v820 = vadd.f32 %v819, %v797
      %v821 = vadd.f32 %v820, %v798
      %v822 = vadd.f32 %v821, %v799
      %v823 = vadd.f32 %v822, %v800
      %v824 = vrot.slane %v823, 4
      %v825 = vadd.f32 %v823, %v824
      %v826 = vrot.slane %v825, 2
      %v827 = vadd.f32 %v825, %v826
      %v828 = vrot.slane %v827, 1
      %v829 = vadd.f32 %v827, %v828
      %830 = vst [vmem:[%s206] sm:$0x1] %v829
      %p831 = scmp.lt.s32.totalorder %s16, 1
      %s832 = scalar_select %p831, %s16, 1
      %s833 = smul.addr %s832, 8
      %s834 = smul.addr %s833, 4
      %s835 = scalar_lea.vmem %s3, %s834
      %p836 = scmp.lt.s32.totalorder %s16, 1
      %s837 = scalar_select %p836, %s16, 1
      %s838 = scalar_lea.vmem %s4, %s837
      // Predicated region
      $region33: #{diabetic_efficientnet_forward.7} parent=31 // pred_check
        %p839 = pneg %p102
      $region34: #{diabetic_efficientnet_forward.7} parent=31 // pred_check_branch
        %841 = sbr.rel (%p839) target = $region36
      $region35: #{diabetic_efficientnet_forward.7} parent=31 // pred_region
        _
      $region36: #{diabetic_efficientnet_forward.7} parent=31 // pred_fallthru
        _
      // Predicated region
      $region37: #{diabetic_efficientnet_forward.7} parent=31 // pred_check
        %p842 = pneg %p128
      $region38: #{diabetic_efficientnet_forward.7} parent=31 // pred_check_branch
        %844 = sbr.rel (%p842) target = $region40
      $region39: #{diabetic_efficientnet_forward.7} parent=31 // pred_region
        _
      $region40: #{diabetic_efficientnet_forward.7} parent=31 // pred_fallthru
        _
    $region32: #{diabetic_efficientnet_forward.7} parent=5 // pred_fallthru
      _
    %p845 = scmp.le.s32.totalorder 2, %s11
    // Predicated region
    $region41: #{diabetic_efficientnet_forward.7} parent=5 // pred_check
      %p846 = pneg %p845
    $region42: #{diabetic_efficientnet_forward.7} parent=5 // pred_check_branch
      %848 = sbr.rel (%p846) target = $region44
    $region43: #{diabetic_efficientnet_forward.7} parent=5 // pred_region
      %s849 = ssub.s32 %s11, 2
      // Predicated region
      $region45: #{diabetic_efficientnet_forward.7} parent=43 // pred_check
        %p850 = pneg %p108
      $region46: #{diabetic_efficientnet_forward.7} parent=43 // pred_check_branch
        %852 = sbr.rel (%p850) target = $region48
      $region47: #{diabetic_efficientnet_forward.7} parent=43 // pred_region
        %p853 = scmp.lt.s32.totalorder %s17, 1
        %s854 = scalar_select %p853, %s17, 1
        %s855 = smul.addr %s854, 8
        %s856 = smul.addr %s855, 4
        %s857 = scalar_lea.vmem %s3, %s856
      $region48: #{diabetic_efficientnet_forward.7} parent=43 // pred_fallthru
        _
      // Predicated region
      $region49: #{diabetic_efficientnet_forward.7} parent=43 // pred_check
        %p858 = pneg %p134
      $region50: #{diabetic_efficientnet_forward.7} parent=43 // pred_check_branch
        %860 = sbr.rel (%p858) target = $region52
      $region51: #{diabetic_efficientnet_forward.7} parent=43 // pred_region
        %p861 = scmp.lt.s32.totalorder %s17, 1
        %s862 = scalar_select %p861, %s17, 1
        %s863 = scalar_lea.vmem %s4, %s862
      $region52: #{diabetic_efficientnet_forward.7} parent=43 // pred_fallthru
        _
    $region44: #{diabetic_efficientnet_forward.7} parent=5 // pred_fallthru
      _
  $region6: #{diabetic_efficientnet_forward.7} parent=0 // loop_footer
    %s15 = sadd.s32 1, %s11
  $region7: #{diabetic_efficientnet_forward.7} parent=0 // loop_footer_branch
    %10 = sbr.rel target = $region3
  $region8: #{diabetic_efficientnet_forward.7} parent=0 // loop_exit
    _

// kernel: diabetic_efficientnet_forward.8
$region0: #{diabetic_efficientnet_forward.8}
  #allocation0 [shape = 'u32[]', space=smem, size = 0x4, offset = 0x4, fixed_abs, tag = 'smem constant byte address 0x4 - core index']
  #allocation1 [shape = 'u32[72,128]{1,0:T(1,128)}', space=vmem, size = 0x9000, scoped, tag = 'internal scratch']
  %s0 = inlined_call_operand.vmem [shape: bf16[2,64,128], index: 0, kind: input, shape index: {}]
  %s1 = inlined_call_operand.vmem [shape: f32[2,1,128], index: 1, kind: input, shape index: {}]
  %s2 = inlined_call_operand.vmem [shape: bf16[128,128], index: 2, kind: input, shape index: {}]
  %s3 = inlined_call_operand.vmem [shape: f32[1,128], index: 3, kind: input, shape index: {}]
  %s4 = inlined_call_operand.vmem [shape: bf16[2,64,128], index: 4, kind: input, shape index: {}]
  %s5 = inlined_call_operand.vmem [shape: bf16[2,64,128], index: 5, kind: output, shape index: {}]
  %s6 = sld [smem:[#allocation0]]
  $region53: #{diabetic_efficientnet_forward.8} parent=0
    _
  %s8 = ssub.s32 1, %s6
  %s9 = scalar_select 0, %s8, %s6
  loop: start=0, step=1, limit=4
  $region2: #{diabetic_efficientnet_forward.8} parent=0 // loop_pre_header
    _
  $region3: #{diabetic_efficientnet_forward.8} parent=0 // loop_header
    %s11 = sphi 0, %s15
    %p12 = scmp.ge.s32.totalorder %s11, 4
    %s18 = sphi 0, %s30
    %s19 = sphi 0, %s26
    %s20 = sphi 0, %s18
    %s21 = sphi 0, %s19
    %s22 = sphi 0, %s20
    %s23 = sphi 0, %s21
    %s35 = sphi 0, %s37
    %s38 = sphi 0, %s35
    %s39 = sphi 0, %s38
    %s55 = sphi 0, %s39
    %s61 = sphi 0, %s63
    %s64 = sphi 0, %s61
    %s65 = sphi 0, %s64
    %s81 = sphi 0, %s65
    %s85 = sphi 0, %s85
    %s87 = sphi 0, %s85
    %s88 = sphi 0, %s87
    %s102 = sphi 0, %s88
    %s106 = sphi 0, %s106
    %s108 = sphi 0, %s106
    %s109 = sphi 0, %s108
    %s123 = sphi 0, %s109
    %s131 = sphi 0, %s133
    %s134 = sphi 0, %s131
    %s135 = sphi 0, %s134
    %s151 = sphi 0, %s135
    %s159 = sphi 0, %s161
    %s162 = sphi 0, %s159
    %s163 = sphi 0, %s162
    %s179 = sphi 0, %s163
  $region4: #{diabetic_efficientnet_forward.8} parent=0 // loop_header_branch
    %14 = sbr.rel (%p12) target = $region8
  $region5: #{diabetic_efficientnet_forward.8} parent=0 // loop_body
    %s16 = ssub.s32 %s11, 1
    %s17 = ssub.s32 %s11, 2
    %s24 = sadd.s32 1, %s19
    %p25 = scmp.ge.s32.totalorder %s24, 1
    %s26 = scalar_select %p25, 0, %s24
    %s27 = sadd.s32 1, %s18
    %s28 = scalar_select %p25, %s27, %s18
    %p29 = scmp.ge.s32.totalorder %s28, 2
    %s30 = scalar_select %p29, 0, %s28
    %s31 = ssub.s32 %s18, %s30
    %s32 = ssub.s32 %s19, %s26
    %s33 = sor.u32 %s31, %s32
    %p34 = scmp.eq.s32.totalorder %s33, 0
    %s36 = sadd.s32 %s35, 1
    %s37 = scalar_select %p34, %s35, %s36
    %p40 = pneg %p34
    %p41 = scmp.eq.s32.totalorder %s11, 1
    %p42 = por %p40, %p41
    %p43 = scmp.ne.s32.totalorder %s35, %s38
    %p44 = scmp.eq.s32.totalorder %s11, 0
    %p45 = por %p43, %p44
    %p46 = scmp.ne.s32.totalorder %s35, %s38
    %p47 = scmp.eq.s32.totalorder %s16, 1
    %p48 = por %p46, %p47
    %p49 = scmp.ne.s32.totalorder %s38, %s39
    %p50 = scmp.eq.s32.totalorder %s16, 0
    %p51 = por %p49, %p50
    %p52 = scmp.ne.s32.totalorder %s38, %s39
    %p53 = scmp.eq.s32.totalorder %s17, 1
    %p54 = por %p52, %p53
    %p56 = scmp.ne.s32.totalorder %s39, %s55
    %p57 = scmp.eq.s32.totalorder %s17, 0
    %p58 = por %p56, %p57
    %s59 = ssub.s32 %s18, %s30
    %p60 = scmp.eq.s32.totalorder %s59, 0
    %s62 = sadd.s32 %s61, 1
    %s63 = scalar_select %p60, %s61, %s62
    %p66 = pneg %p60
    %p67 = scmp.eq.s32.totalorder %s11, 1
    %p68 = por %p66, %p67
    %p69 = scmp.ne.s32.totalorder %s61, %s64
    %p70 = scmp.eq.s32.totalorder %s11, 0
    %p71 = por %p69, %p70
    %p72 = scmp.ne.s32.totalorder %s61, %s64
    %p73 = scmp.eq.s32.totalorder %s16, 1
    %p74 = por %p72, %p73
    %p75 = scmp.ne.s32.totalorder %s64, %s65
    %p76 = scmp.eq.s32.totalorder %s16, 0
    %p77 = por %p75, %p76
    %p78 = scmp.ne.s32.totalorder %s64, %s65
    %p79 = scmp.eq.s32.totalorder %s17, 1
    %p80 = por %p78, %p79
    %p82 = scmp.ne.s32.totalorder %s65, %s81
    %p83 = scmp.eq.s32.totalorder %s17, 0
    %p84 = por %p82, %p83
    %s86 = sadd.s32 %s85, 1
    %p89 = scmp.eq.s32.totalorder %s11, 1
    %p90 = scmp.ne.s32.totalorder %s85, %s87
    %p91 = scmp.eq.s32.totalorder %s11, 0
    %p92 = por %p90, %p91
    %p93 = scmp.ne.s32.totalorder %s85, %s87
    %p94 = scmp.eq.s32.totalorder %s16, 1
    %p95 = por %p93, %p94
    %p96 = scmp.ne.s32.totalorder %s87, %s88
    %p97 = scmp.eq.s32.totalorder %s16, 0
    %p98 = por %p96, %p97
    %p99 = scmp.ne.s32.totalorder %s87, %s88
    %p100 = scmp.eq.s32.totalorder %s17, 1
    %p101 = por %p99, %p100
    %p103 = scmp.ne.s32.totalorder %s88, %s102
    %p104 = scmp.eq.s32.totalorder %s17, 0
    %p105 = por %p103, %p104
    %s107 = sadd.s32 %s106, 1
    %p110 = scmp.eq.s32.totalorder %s11, 1
    %p111 = scmp.ne.s32.totalorder %s106, %s108
    %p112 = scmp.eq.s32.totalorder %s11, 0
    %p113 = por %p111, %p112
    %p114 = scmp.ne.s32.totalorder %s106, %s108
    %p115 = scmp.eq.s32.totalorder %s16, 1
    %p116 = por %p114, %p115
    %p117 = scmp.ne.s32.totalorder %s108, %s109
    %p118 = scmp.eq.s32.totalorder %s16, 0
    %p119 = por %p117, %p118
    %p120 = scmp.ne.s32.totalorder %s108, %s109
    %p121 = scmp.eq.s32.totalorder %s17, 1
    %p122 = por %p120, %p121
    %p124 = scmp.ne.s32.totalorder %s109, %s123
    %p125 = scmp.eq.s32.totalorder %s17, 0
    %p126 = por %p124, %p125
    %s127 = ssub.s32 %s18, %s30
    %s128 = ssub.s32 %s19, %s26
    %s129 = sor.u32 %s127, %s128
    %p130 = scmp.eq.s32.totalorder %s129, 0
    %s132 = sadd.s32 %s131, 1
    %s133 = scalar_select %p130, %s131, %s132
    %p136 = pneg %p130
    %p137 = scmp.eq.s32.totalorder %s11, 1
    %p138 = por %p136, %p137
    %p139 = scmp.ne.s32.totalorder %s131, %s134
    %p140 = scmp.eq.s32.totalorder %s11, 0
    %p141 = por %p139, %p140
    %p142 = scmp.ne.s32.totalorder %s131, %s134
    %p143 = scmp.eq.s32.totalorder %s16, 1
    %p144 = por %p142, %p143
    %p145 = scmp.ne.s32.totalorder %s134, %s135
    %p146 = scmp.eq.s32.totalorder %s16, 0
    %p147 = por %p145, %p146
    %p148 = scmp.ne.s32.totalorder %s134, %s135
    %p149 = scmp.eq.s32.totalorder %s17, 1
    %p150 = por %p148, %p149
    %p152 = scmp.ne.s32.totalorder %s135, %s151
    %p153 = scmp.eq.s32.totalorder %s17, 0
    %p154 = por %p152, %p153
    %s155 = ssub.s32 %s18, %s30
    %s156 = ssub.s32 %s19, %s26
    %s157 = sor.u32 %s155, %s156
    %p158 = scmp.eq.s32.totalorder %s157, 0
    %s160 = sadd.s32 %s159, 1
    %s161 = scalar_select %p158, %s159, %s160
    %p164 = pneg %p158
    %p165 = scmp.eq.s32.totalorder %s11, 1
    %p166 = por %p164, %p165
    %p167 = scmp.ne.s32.totalorder %s159, %s162
    %p168 = scmp.eq.s32.totalorder %s11, 0
    %p169 = por %p167, %p168
    %p170 = scmp.ne.s32.totalorder %s159, %s162
    %p171 = scmp.eq.s32.totalorder %s16, 1
    %p172 = por %p170, %p171
    %p173 = scmp.ne.s32.totalorder %s162, %s163
    %p174 = scmp.eq.s32.totalorder %s16, 0
    %p175 = por %p173, %p174
    %p176 = scmp.ne.s32.totalorder %s162, %s163
    %p177 = scmp.eq.s32.totalorder %s17, 1
    %p178 = por %p176, %p177
    %p180 = scmp.ne.s32.totalorder %s163, %s179
    %p181 = scmp.eq.s32.totalorder %s17, 0
    %p182 = por %p180, %p181
    %p183 = scmp.le.s32.totalorder 1, %s11
    %p184 = scmp.lt.s32.totalorder %s11, 3
    %p185 = pnand %p183, %p184
    %p186 = pneg %p185
    // Predicated region
    $region9: #{diabetic_efficientnet_forward.8} parent=5 // pred_check
      _
    $region10: #{diabetic_efficientnet_forward.8} parent=5 // pred_check_branch
      %188 = sbr.rel (%p185) target = $region12
    $region11: #{diabetic_efficientnet_forward.8} parent=5 // pred_region
      %s189 = ssub.s32 %s11, 1
      // Predicated region
      $region13: #{diabetic_efficientnet_forward.8} parent=11 // pred_check
        %p190 = pneg %p98
      $region14: #{diabetic_efficientnet_forward.8} parent=11 // pred_check_branch
        %192 = sbr.rel (%p190) target = $region16
      $region15: #{diabetic_efficientnet_forward.8} parent=11 // pred_region
        _
      $region16: #{diabetic_efficientnet_forward.8} parent=11 // pred_fallthru
        _
      // Predicated region
      $region17: #{diabetic_efficientnet_forward.8} parent=11 // pred_check
        %p193 = pneg %p119
      $region18: #{diabetic_efficientnet_forward.8} parent=11 // pred_check_branch
        %195 = sbr.rel (%p193) target = $region20
      $region19: #{diabetic_efficientnet_forward.8} parent=11 // pred_region
        _
      $region20: #{diabetic_efficientnet_forward.8} parent=11 // pred_fallthru
        _
    $region12: #{diabetic_efficientnet_forward.8} parent=5 // pred_fallthru
      _
    %p196 = scmp.lt.s32.totalorder %s11, 2
    // Predicated region
    $region21: #{diabetic_efficientnet_forward.8} parent=5 // pred_check
      %p197 = pneg %p196
    $region22: #{diabetic_efficientnet_forward.8} parent=5 // pred_check_branch
      %199 = sbr.rel (%p197) target = $region24
    $region23: #{diabetic_efficientnet_forward.8} parent=5 // pred_region
      // Predicated region
      $region25: #{diabetic_efficientnet_forward.8} parent=23 // pred_check
        %p200 = pneg %p45
      $region26: #{diabetic_efficientnet_forward.8} parent=23 // pred_check_branch
        %202 = sbr.rel (%p200) target = $region28
      $region27: #{diabetic_efficientnet_forward.8} parent=23 // pred_region
        %s203 = smul.u32 8, %s19
        %p204 = scmp.lt.s32.totalorder %s18, 1
        %s205 = scalar_select %p204, %s18, 1
        %p206 = scmp.lt.s32.totalorder %s203, 7
        %s207 = scalar_select %p206, %s203, 7
        %s208 = smul.addr %s205, 8
        %s209 = sadd.s32 %s207, %s208
        %s210 = smul.addr %s209, 4
        %s211 = scalar_lea.vmem %s0, %s210
        %s212 = smul.u32 8, %s19
      $region28: #{diabetic_efficientnet_forward.8} parent=23 // pred_fallthru
        _
      // Predicated region
      $region29: #{diabetic_efficientnet_forward.8} parent=23 // pred_check
        %p213 = pneg %p71
      $region30: #{diabetic_efficientnet_forward.8} parent=23 // pred_check_branch
        %215 = sbr.rel (%p213) target = $region32
      $region31: #{diabetic_efficientnet_forward.8} parent=23 // pred_region
        %p216 = scmp.lt.s32.totalorder %s18, 1
        %s217 = scalar_select %p216, %s18, 1
        %s218 = scalar_lea.vmem %s1, %s217
      $region32: #{diabetic_efficientnet_forward.8} parent=23 // pred_fallthru
        _
      // Predicated region
      $region33: #{diabetic_efficientnet_forward.8} parent=23 // pred_check
        %p219 = pneg %p141
      $region34: #{diabetic_efficientnet_forward.8} parent=23 // pred_check_branch
        %221 = sbr.rel (%p219) target = $region36
      $region35: #{diabetic_efficientnet_forward.8} parent=23 // pred_region
        %s222 = smul.u32 8, %s19
        %p223 = scmp.lt.s32.totalorder %s18, 1
        %s224 = scalar_select %p223, %s18, 1
        %p225 = scmp.lt.s32.totalorder %s222, 7
        %s226 = scalar_select %p225, %s222, 7
        %s227 = smul.addr %s224, 8
        %s228 = sadd.s32 %s226, %s227
        %s229 = smul.addr %s228, 4
        %s230 = scalar_lea.vmem %s4, %s229
        %s231 = smul.u32 8, %s19
      $region36: #{diabetic_efficientnet_forward.8} parent=23 // pred_fallthru
        _
    $region24: #{diabetic_efficientnet_forward.8} parent=5 // pred_fallthru
      _
    %p232 = scmp.le.s32.totalorder 1, %s11
    %p233 = scmp.lt.s32.totalorder %s11, 3
    %p234 = pnand %p232, %p233
    %p235 = pneg %p234
    // Predicated region
    $region37: #{diabetic_efficientnet_forward.8} parent=5 // pred_check
      _
    $region38: #{diabetic_efficientnet_forward.8} parent=5 // pred_check_branch
      %237 = sbr.rel (%p234) target = $region40
    $region39: #{diabetic_efficientnet_forward.8} parent=5 // pred_region
      %s238 = ssub.s32 %s11, 1
      %s239 = smul.u32 8, %s21
      %p240 = scmp.lt.s32.totalorder %s20, 1
      %s241 = scalar_select %p240, %s20, 1
      %p242 = scmp.lt.s32.totalorder %s239, 7
      %s243 = scalar_select %p242, %s239, 7
      %s244 = smul.addr %s241, 8
      %s245 = sadd.s32 %s243, %s244
      %s246 = smul.addr %s245, 4
      %s247 = scalar_lea.vmem %s0, %s246
      %p248 = pneg %p51
      %p249 = pneg %p48
      %p250 = scmp.lt.s32.totalorder %s20, 1
      %s251 = scalar_select %p250, %s20, 1
      %s252 = scalar_lea.vmem %s1, %s251
      %p253 = pneg %p77
      %p254 = pneg %p74
      %p255 = pneg %p98
      %p256 = pneg %p95
      %p257 = pneg %p119
      %p258 = pneg %p116
      %s259 = smul.u32 8, %s21
      %p260 = scmp.lt.s32.totalorder %s20, 1
      %s261 = scalar_select %p260, %s20, 1
      %p262 = scmp.lt.s32.totalorder %s259, 7
      %s263 = scalar_select %p262, %s259, 7
      %s264 = smul.addr %s261, 8
      %s265 = sadd.s32 %s263, %s264
      %s266 = smul.addr %s265, 4
      %s267 = scalar_lea.vmem %s4, %s266
      %p268 = pneg %p147
      %p269 = pneg %p144
      %p270 = pneg %p175
      %p271 = pneg %p172
      %s272 = smul.u32 8, %s21
      %p273 = scmp.lt.s32.totalorder %s20, 1
      %s274 = scalar_select %p273, %s20, 1
      %p275 = scmp.lt.s32.totalorder %s272, 7
      %s276 = scalar_select %p275, %s272, 7
      %s277 = smul.addr %s274, 8
      %s278 = sadd.s32 %s276, %s277
      %s279 = smul.addr %s278, 4
      %s280 = scalar_lea.vmem %s5, %s279
      %s281 = smul.u32 8, %s21
      %p282 = scmp.lt.s32.totalorder %s20, 1
      %s283 = scalar_select %p282, %s20, 1
      %p284 = scmp.lt.s32.totalorder %s281, 7
      %s285 = scalar_select %p284, %s281, 7
      %s286 = smul.addr %s283, 8
      %s287 = sadd.s32 %s285, %s286
      %s288 = smul.addr %s287, 4
      %s289 = scalar_lea.vmem %s0, %s288
      %s290 = smul.u32 8, %s21
      %p291 = scmp.lt.s32.totalorder %s20, 1
      %s292 = scalar_select %p291, %s20, 1
      %s293 = scalar_lea.vmem %s1, %s292
      %s294 = smul.u32 8, %s21
      %p295 = scmp.lt.s32.totalorder %s20, 1
      %s296 = scalar_select %p295, %s20, 1
      %p297 = scmp.lt.s32.totalorder %s294, 7
      %s298 = scalar_select %p297, %s294, 7
      %s299 = smul.addr %s296, 8
      %s300 = sadd.s32 %s298, %s299
      %s301 = smul.addr %s300, 4
      %s302 = scalar_lea.vmem %s4, %s301
      %s303 = smul.u32 8, %s21
      %s304 = smul.u32 8, %s21
      %p305 = scmp.lt.s32.totalorder %s20, 1
      %s306 = scalar_select %p305, %s20, 1
      %p307 = scmp.lt.s32.totalorder %s304, 7
      %s308 = scalar_select %p307, %s304, 7
      %s309 = smul.addr %s306, 8
      %s310 = sadd.s32 %s308, %s309
      %s311 = smul.addr %s310, 4
      %s312 = scalar_lea.vmem %s5, %s311
      %s313 = smul.u32 8, %s21
      %v314 = vld [vmem:[%s289] sm:$0xf]
      %v315 = vld [vmem:[%s289 + $0x4] sm:$0xf]
      %v316 = vld [vmem:[%s289 + $0x8] sm:$0xf]
      %v317 = vld [vmem:[%s289 + $0xc] sm:$0xf]
      %v318 = vld [vmem:[%s289 + $0x10] sm:$0xf]
      %v319 = vld [vmem:[%s289 + $0x14] sm:$0xf]
      %v320 = vld [vmem:[%s289 + $0x18] sm:$0xf]
      %v321 = vld [vmem:[%s289 + $0x1c] sm:$0xf]
      %v322 = vunpack.c.l.bf16 %v314
      %v323 = vunpack.c.l.bf16 %v315
      %v324 = vunpack.c.l.bf16 %v316
      %v325 = vunpack.c.l.bf16 %v317
      %v326 = vunpack.c.l.bf16 %v318
      %v327 = vunpack.c.l.bf16 %v319
      %v328 = vunpack.c.l.bf16 %v320
      %v329 = vunpack.c.l.bf16 %v321
      %v330 = vld [vmem:[%s293] sm:$0x1]
      %v332 = vperm.slane %v330, 0
      %v334 = vmul.f32 %v322, %v332
      %v335 = vmul.f32 %v323, %v332
      %v336 = vmul.f32 %v324, %v332
      %v337 = vmul.f32 %v325, %v332
      %v338 = vmul.f32 %v326, %v332
      %v339 = vmul.f32 %v327, %v332
      %v340 = vmul.f32 %v328, %v332
      %v341 = vmul.f32 %v329, %v332
      %v342 = vpack.c.bf16 %v335, %v334
      %v343 = vpack.c.bf16 %v337, %v336
      %v344 = vpack.c.bf16 %v339, %v338
      %v345 = vpack.c.bf16 %v341, %v340
      %v346 = vld [vmem:[%s2] sm:$0xf]
      %v347 = vld [vmem:[%s2 + $0x4] sm:$0xf]
      %v348 = vld [vmem:[%s2 + $0x8] sm:$0xf]
      %v349 = vld [vmem:[%s2 + $0xc] sm:$0xf]
      %v350 = vld [vmem:[%s2 + $0x10] sm:$0xf]
      %v351 = vld [vmem:[%s2 + $0x14] sm:$0xf]
      %v352 = vld [vmem:[%s2 + $0x18] sm:$0xf]
      %v353 = vld [vmem:[%s2 + $0x1c] sm:$0xf]
      %v354 = vld [vmem:[%s2 + $0x20] sm:$0xf]
      %v355 = vld [vmem:[%s2 + $0x24] sm:$0xf]
      %v356 = vld [vmem:[%s2 + $0x28] sm:$0xf]
      %v357 = vld [vmem:[%s2 + $0x2c] sm:$0xf]
      %v358 = vld [vmem:[%s2 + $0x30] sm:$0xf]
      %v359 = vld [vmem:[%s2 + $0x34] sm:$0xf]
      %v360 = vld [vmem:[%s2 + $0x38] sm:$0xf]
      %v361 = vld [vmem:[%s2 + $0x3c] sm:$0xf]
      %v362 = vld [vmem:[%s3] sm:$0x1]
      %v364 = vperm.slane %v362, 0
      %v382 = vunpack.c.l.b16 %v346
      %v383 = vunpack.c.l.b16 %v347
      %v384 = vunpack.c.l.b16 %v348
      %v385 = vunpack.c.l.b16 %v349
      %v386 = vunpack.c.l.b16 %v350
      %v387 = vunpack.c.l.b16 %v351
      %v388 = vunpack.c.l.b16 %v352
      %v389 = vunpack.c.l.b16 %v353
      %v390 = vunpack.c.l.b16 %v354
      %v391 = vunpack.c.l.b16 %v355
      %v392 = vunpack.c.l.b16 %v356
      %v393 = vunpack.c.l.b16 %v357
      %v394 = vunpack.c.l.b16 %v358
      %v395 = vunpack.c.l.b16 %v359
      %v396 = vunpack.c.l.b16 %v360
      %v397 = vunpack.c.l.b16 %v361
      %v398 = vpack.c.b16 %v383, %v382
      %v399 = vpack.c.b16 %v385, %v384
      %v400 = vpack.c.b16 %v387, %v386
      %v401 = vpack.c.b16 %v389, %v388
      %v402 = vpack.c.b16 %v391, %v390
      %v403 = vpack.c.b16 %v393, %v392
      %v404 = vpack.c.b16 %v395, %v394
      %v405 = vpack.c.b16 %v397, %v396
      %414 = vmatpush.bf16.msra.mxu0 %v405
      %415 = vmatpush.bf16.msra.mxu0 %v404
      %416 = vmatpush.bf16.msra.mxu0 %v403
      %417 = vmatpush.bf16.msra.mxu0 %v402
      %418 = vmatpush.bf16.msra.mxu0 %v401
      %419 = vmatpush.bf16.msra.mxu0 %v400
      %420 = vmatpush.bf16.msra.mxu0 %v399
      %421 = vmatpush.bf16.msra.mxu0 %v398
      %422 = vmatmul.bf16.gmra.mxu0 %v342
      %v423 = vpop.f32.mrf.mxu0
      %v424 = vadd.f32 %v364, %v423
      %v425 = vpop.f32.mrf.mxu0
      %v426 = vadd.f32 %v364, %v425
      %427 = vmatmul.bf16.gmra.mxu0 %v343
      %v428 = vpop.f32.mrf.mxu0
      %v429 = vadd.f32 %v364, %v428
      %v430 = vpop.f32.mrf.mxu0
      %v431 = vadd.f32 %v364, %v430
      %432 = vmatmul.bf16.gmra.mxu0 %v344
      %v433 = vpop.f32.mrf.mxu0
      %v434 = vadd.f32 %v364, %v433
      %v435 = vpop.f32.mrf.mxu0
      %v436 = vadd.f32 %v364, %v435
      %437 = vmatmul.bf16.gmra.mxu0 %v345
      %v438 = vpop.f32.mrf.mxu0
      %v439 = vadd.f32 %v364, %v438
      %v440 = vpop.f32.mrf.mxu0
      %v441 = vadd.f32 %v364, %v440
      %442 = vdwg.mxu0
      %v443 = vld [vmem:[%s302] sm:$0xf]
      %v444 = vld [vmem:[%s302 + $0x4] sm:$0xf]
      %v445 = vld [vmem:[%s302 + $0x8] sm:$0xf]
      %v446 = vld [vmem:[%s302 + $0xc] sm:$0xf]
      %v447 = vld [vmem:[%s302 + $0x10] sm:$0xf]
      %v448 = vld [vmem:[%s302 + $0x14] sm:$0xf]
      %v449 = vld [vmem:[%s302 + $0x18] sm:$0xf]
      %v450 = vld [vmem:[%s302 + $0x1c] sm:$0xf]
      %v451 = vunpack.c.l.bf16 %v443
      %v452 = vunpack.c.l.bf16 %v444
      %v453 = vunpack.c.l.bf16 %v445
      %v454 = vunpack.c.l.bf16 %v446
      %v455 = vunpack.c.l.bf16 %v447
      %v456 = vunpack.c.l.bf16 %v448
      %v457 = vunpack.c.l.bf16 %v449
      %v458 = vunpack.c.l.bf16 %v450
      %v459 = vadd.f32 %v424, %v451
      %v460 = vadd.f32 %v426, %v452
      %v461 = vadd.f32 %v429, %v453
      %v462 = vadd.f32 %v431, %v454
      %v463 = vadd.f32 %v434, %v455
      %v464 = vadd.f32 %v436, %v456
      %v465 = vadd.f32 %v439, %v457
      %v466 = vadd.f32 %v441, %v458
      %v467 = vpack.c.bf16 %v459, %v459
      %v468 = vpack.c.bf16 %v460, %v460
      %v469 = vpack.c.bf16 %v461, %v461
      %v470 = vpack.c.bf16 %v462, %v462
      %v471 = vpack.c.bf16 %v463, %v463
      %v472 = vpack.c.bf16 %v464, %v464
      %v473 = vpack.c.bf16 %v465, %v465
      %v474 = vpack.c.bf16 %v466, %v466
      %475 = vst [vmem:[%s312] sm:$0xf] %v467
      %476 = vst [vmem:[%s312 + $0x4] sm:$0xf] %v468
      %477 = vst [vmem:[%s312 + $0x8] sm:$0xf] %v469
      %478 = vst [vmem:[%s312 + $0xc] sm:$0xf] %v470
      %479 = vst [vmem:[%s312 + $0x10] sm:$0xf] %v471
      %480 = vst [vmem:[%s312 + $0x14] sm:$0xf] %v472
      %481 = vst [vmem:[%s312 + $0x18] sm:$0xf] %v473
      %482 = vst [vmem:[%s312 + $0x1c] sm:$0xf] %v474
      %s483 = smul.u32 8, %s21
      %p484 = scmp.lt.s32.totalorder %s20, 1
      %s485 = scalar_select %p484, %s20, 1
      %p486 = scmp.lt.s32.totalorder %s483, 7
      %s487 = scalar_select %p486, %s483, 7
      %s488 = smul.addr %s485, 8
      %s489 = sadd.s32 %s487, %s488
      %s490 = smul.addr %s489, 4
      %s491 = scalar_lea.vmem %s5, %s490
      // Predicated region
      $region41: #{diabetic_efficientnet_forward.8} parent=39 // pred_check
        %p492 = pneg %p172
      $region42: #{diabetic_efficientnet_forward.8} parent=39 // pred_check_branch
        %494 = sbr.rel (%p492) target = $region44
      $region43: #{diabetic_efficientnet_forward.8} parent=39 // pred_region
        %s495 = smul.u32 8, %s21
      $region44: #{diabetic_efficientnet_forward.8} parent=39 // pred_fallthru
        _
    $region40: #{diabetic_efficientnet_forward.8} parent=5 // pred_fallthru
      _
    %p496 = scmp.le.s32.totalorder 2, %s11
    // Predicated region
    $region45: #{diabetic_efficientnet_forward.8} parent=5 // pred_check
      %p497 = pneg %p496
    $region46: #{diabetic_efficientnet_forward.8} parent=5 // pred_check_branch
      %499 = sbr.rel (%p497) target = $region48
    $region47: #{diabetic_efficientnet_forward.8} parent=5 // pred_region
      %s500 = ssub.s32 %s11, 2
      // Predicated region
      $region49: #{diabetic_efficientnet_forward.8} parent=47 // pred_check
        %p501 = pneg %p178
      $region50: #{diabetic_efficientnet_forward.8} parent=47 // pred_check_branch
        %503 = sbr.rel (%p501) target = $region52
      $region51: #{diabetic_efficientnet_forward.8} parent=47 // pred_region
        %s504 = smul.u32 8, %s23
        %p505 = scmp.lt.s32.totalorder %s22, 1
        %s506 = scalar_select %p505, %s22, 1
        %p507 = scmp.lt.s32.totalorder %s504, 7
        %s508 = scalar_select %p507, %s504, 7
        %s509 = smul.addr %s506, 8
        %s510 = sadd.s32 %s508, %s509
        %s511 = smul.addr %s510, 4
        %s512 = scalar_lea.vmem %s5, %s511
      $region52: #{diabetic_efficientnet_forward.8} parent=47 // pred_fallthru
        _
    $region48: #{diabetic_efficientnet_forward.8} parent=5 // pred_fallthru
      _
  $region6: #{diabetic_efficientnet_forward.8} parent=0 // loop_footer
    %s15 = sadd.s32 1, %s11
  $region7: #{diabetic_efficientnet_forward.8} parent=0 // loop_footer_branch
    %10 = sbr.rel target = $region3
  $region8: #{diabetic_efficientnet_forward.8} parent=0 // loop_exit
    _

// kernel: diabetic_efficientnet_forward.9
$region0: #{diabetic_efficientnet_forward.9}
  #allocation0 [shape = 'u32[]', space=smem, size = 0x4, offset = 0x4, fixed_abs, tag = 'smem constant byte address 0x4 - core index']
  #allocation1 [shape = 'u32[72,128]{1,0:T(1,128)}', space=vmem, size = 0x9000, scoped, tag = 'internal scratch']
  #allocation2 [shape = 'f32[1,128]{1,0:T(1,128)}', space=vmem, size = 0x200, scoped, tag = 'scratch operand']
  %s0 = inlined_call_operand.vmem [shape: bf16[2,64,128], index: 0, kind: input, shape index: {}]
  %s1 = inlined_call_operand.vmem [shape: bf16[128,128], index: 1, kind: input, shape index: {}]
  %s2 = inlined_call_operand.vmem [shape: f32[1,128], index: 2, kind: input, shape index: {}]
  %s3 = inlined_call_operand.vmem [shape: f32[2,1,128], index: 3, kind: output, shape index: {}]
  %s4 = sld [smem:[#allocation0]]
  $region53: #{diabetic_efficientnet_forward.9} parent=0
    _
  %s6 = ssub.s32 1, %s4
  %s7 = scalar_select 0, %s6, %s4
  loop: start=0, step=1, limit=4
  $region2: #{diabetic_efficientnet_forward.9} parent=0 // loop_pre_header
    _
  $region3: #{diabetic_efficientnet_forward.9} parent=0 // loop_header
    %s9 = sphi 0, %s13
    %p10 = scmp.ge.s32.totalorder %s9, 4
    %s16 = sphi 0, %s28
    %s17 = sphi 0, %s24
    %s18 = sphi 0, %s16
    %s19 = sphi 0, %s17
    %s20 = sphi 0, %s18
    %s21 = sphi 0, %s19
    %s33 = sphi 0, %s35
    %s36 = sphi 0, %s33
    %s37 = sphi 0, %s36
    %s53 = sphi 0, %s37
    %s57 = sphi 0, %s57
    %s59 = sphi 0, %s57
    %s60 = sphi 0, %s59
    %s74 = sphi 0, %s60
    %s78 = sphi 0, %s78
    %s80 = sphi 0, %s78
    %s81 = sphi 0, %s80
    %s95 = sphi 0, %s81
    %s101 = sphi 0, %s103
    %s104 = sphi 0, %s101
    %s105 = sphi 0, %s104
    %s121 = sphi 0, %s105
  $region4: #{diabetic_efficientnet_forward.9} parent=0 // loop_header_branch
    %12 = sbr.rel (%p10) target = $region8
  $region5: #{diabetic_efficientnet_forward.9} parent=0 // loop_body
    %s14 = ssub.s32 %s9, 1
    %s15 = ssub.s32 %s9, 2
    %s22 = sadd.s32 1, %s17
    %p23 = scmp.ge.s32.totalorder %s22, 1
    %s24 = scalar_select %p23, 0, %s22
    %s25 = sadd.s32 1, %s16
    %s26 = scalar_select %p23, %s25, %s16
    %p27 = scmp.ge.s32.totalorder %s26, 2
    %s28 = scalar_select %p27, 0, %s26
    %s29 = ssub.s32 %s16, %s28
    %s30 = ssub.s32 %s17, %s24
    %s31 = sor.u32 %s29, %s30
    %p32 = scmp.eq.s32.totalorder %s31, 0
    %s34 = sadd.s32 %s33, 1
    %s35 = scalar_select %p32, %s33, %s34
    %p38 = pneg %p32
    %p39 = scmp.eq.s32.totalorder %s9, 1
    %p40 = por %p38, %p39
    %p41 = scmp.ne.s32.totalorder %s33, %s36
    %p42 = scmp.eq.s32.totalorder %s9, 0
    %p43 = por %p41, %p42
    %p44 = scmp.ne.s32.totalorder %s33, %s36
    %p45 = scmp.eq.s32.totalorder %s14, 1
    %p46 = por %p44, %p45
    %p47 = scmp.ne.s32.totalorder %s36, %s37
    %p48 = scmp.eq.s32.totalorder %s14, 0
    %p49 = por %p47, %p48
    %p50 = scmp.ne.s32.totalorder %s36, %s37
    %p51 = scmp.eq.s32.totalorder %s15, 1
    %p52 = por %p50, %p51
    %p54 = scmp.ne.s32.totalorder %s37, %s53
    %p55 = scmp.eq.s32.totalorder %s15, 0
    %p56 = por %p54, %p55
    %s58 = sadd.s32 %s57, 1
    %p61 = scmp.eq.s32.totalorder %s9, 1
    %p62 = scmp.ne.s32.totalorder %s57, %s59
    %p63 = scmp.eq.s32.totalorder %s9, 0
    %p64 = por %p62, %p63
    %p65 = scmp.ne.s32.totalorder %s57, %s59
    %p66 = scmp.eq.s32.totalorder %s14, 1
    %p67 = por %p65, %p66
    %p68 = scmp.ne.s32.totalorder %s59, %s60
    %p69 = scmp.eq.s32.totalorder %s14, 0
    %p70 = por %p68, %p69
    %p71 = scmp.ne.s32.totalorder %s59, %s60
    %p72 = scmp.eq.s32.totalorder %s15, 1
    %p73 = por %p71, %p72
    %p75 = scmp.ne.s32.totalorder %s60, %s74
    %p76 = scmp.eq.s32.totalorder %s15, 0
    %p77 = por %p75, %p76
    %s79 = sadd.s32 %s78, 1
    %p82 = scmp.eq.s32.totalorder %s9, 1
    %p83 = scmp.ne.s32.totalorder %s78, %s80
    %p84 = scmp.eq.s32.totalorder %s9, 0
    %p85 = por %p83, %p84
    %p86 = scmp.ne.s32.totalorder %s78, %s80
    %p87 = scmp.eq.s32.totalorder %s14, 1
    %p88 = por %p86, %p87
    %p89 = scmp.ne.s32.totalorder %s80, %s81
    %p90 = scmp.eq.s32.totalorder %s14, 0
    %p91 = por %p89, %p90
    %p92 = scmp.ne.s32.totalorder %s80, %s81
    %p93 = scmp.eq.s32.totalorder %s15, 1
    %p94 = por %p92, %p93
    %p96 = scmp.ne.s32.totalorder %s81, %s95
    %p97 = scmp.eq.s32.totalorder %s15, 0
    %p98 = por %p96, %p97
    %s99 = ssub.s32 %s16, %s28
    %p100 = scmp.eq.s32.totalorder %s99, 0
    %s102 = sadd.s32 %s101, 1
    %s103 = scalar_select %p100, %s101, %s102
    %p106 = pneg %p100
    %p107 = scmp.eq.s32.totalorder %s9, 1
    %p108 = por %p106, %p107
    %p109 = scmp.ne.s32.totalorder %s101, %s104
    %p110 = scmp.eq.s32.totalorder %s9, 0
    %p111 = por %p109, %p110
    %p112 = scmp.ne.s32.totalorder %s101, %s104
    %p113 = scmp.eq.s32.totalorder %s14, 1
    %p114 = por %p112, %p113
    %p115 = scmp.ne.s32.totalorder %s104, %s105
    %p116 = scmp.eq.s32.totalorder %s14, 0
    %p117 = por %p115, %p116
    %p118 = scmp.ne.s32.totalorder %s104, %s105
    %p119 = scmp.eq.s32.totalorder %s15, 1
    %p120 = por %p118, %p119
    %p122 = scmp.ne.s32.totalorder %s105, %s121
    %p123 = scmp.eq.s32.totalorder %s15, 0
    %p124 = por %p122, %p123
    %p125 = scmp.le.s32.totalorder 1, %s9
    %p126 = scmp.lt.s32.totalorder %s9, 3
    %p127 = pnand %p125, %p126
    %p128 = pneg %p127
    // Predicated region
    $region9: #{diabetic_efficientnet_forward.9} parent=5 // pred_check
      _
    $region10: #{diabetic_efficientnet_forward.9} parent=5 // pred_check_branch
      %130 = sbr.rel (%p127) target = $region12
    $region11: #{diabetic_efficientnet_forward.9} parent=5 // pred_region
      %s131 = ssub.s32 %s9, 1
      // Predicated region
      $region13: #{diabetic_efficientnet_forward.9} parent=11 // pred_check
        %p132 = pneg %p70
      $region14: #{diabetic_efficientnet_forward.9} parent=11 // pred_check_branch
        %134 = sbr.rel (%p132) target = $region16
      $region15: #{diabetic_efficientnet_forward.9} parent=11 // pred_region
        _
      $region16: #{diabetic_efficientnet_forward.9} parent=11 // pred_fallthru
        _
      // Predicated region
      $region17: #{diabetic_efficientnet_forward.9} parent=11 // pred_check
        %p135 = pneg %p91
      $region18: #{diabetic_efficientnet_forward.9} parent=11 // pred_check_branch
        %137 = sbr.rel (%p135) target = $region20
      $region19: #{diabetic_efficientnet_forward.9} parent=11 // pred_region
        _
      $region20: #{diabetic_efficientnet_forward.9} parent=11 // pred_fallthru
        _
    $region12: #{diabetic_efficientnet_forward.9} parent=5 // pred_fallthru
      _
    %p138 = scmp.lt.s32.totalorder %s9, 2
    // Predicated region
    $region21: #{diabetic_efficientnet_forward.9} parent=5 // pred_check
      %p139 = pneg %p138
    $region22: #{diabetic_efficientnet_forward.9} parent=5 // pred_check_branch
      %141 = sbr.rel (%p139) target = $region24
    $region23: #{diabetic_efficientnet_forward.9} parent=5 // pred_region
      // Predicated region
      $region25: #{diabetic_efficientnet_forward.9} parent=23 // pred_check
        %p142 = pneg %p43
      $region26: #{diabetic_efficientnet_forward.9} parent=23 // pred_check_branch
        %144 = sbr.rel (%p142) target = $region28
      $region27: #{diabetic_efficientnet_forward.9} parent=23 // pred_region
        %s145 = smul.u32 8, %s17
        %p146 = scmp.lt.s32.totalorder %s16, 1
        %s147 = scalar_select %p146, %s16, 1
        %p148 = scmp.lt.s32.totalorder %s145, 7
        %s149 = scalar_select %p148, %s145, 7
        %s150 = smul.addr %s147, 8
        %s151 = sadd.s32 %s149, %s150
        %s152 = smul.addr %s151, 4
        %s153 = scalar_lea.vmem %s0, %s152
        %s154 = smul.u32 8, %s17
      $region28: #{diabetic_efficientnet_forward.9} parent=23 // pred_fallthru
        _
    $region24: #{diabetic_efficientnet_forward.9} parent=5 // pred_fallthru
      _
    %p155 = scmp.le.s32.totalorder 1, %s9
    %p156 = scmp.lt.s32.totalorder %s9, 3
    %p157 = pnand %p155, %p156
    %p158 = pneg %p157
    // Predicated region
    $region29: #{diabetic_efficientnet_forward.9} parent=5 // pred_check
      _
    $region30: #{diabetic_efficientnet_forward.9} parent=5 // pred_check_branch
      %160 = sbr.rel (%p157) target = $region32
    $region31: #{diabetic_efficientnet_forward.9} parent=5 // pred_region
      %s161 = ssub.s32 %s9, 1
      %s162 = smul.u32 8, %s19
      %p163 = scmp.lt.s32.totalorder %s18, 1
      %s164 = scalar_select %p163, %s18, 1
      %p165 = scmp.lt.s32.totalorder %s162, 7
      %s166 = scalar_select %p165, %s162, 7
      %s167 = smul.addr %s164, 8
      %s168 = sadd.s32 %s166, %s167
      %s169 = smul.addr %s168, 4
      %s170 = scalar_lea.vmem %s0, %s169
      %p171 = pneg %p49
      %p172 = pneg %p46
      %p173 = pneg %p70
      %p174 = pneg %p67
      %p175 = pneg %p91
      %p176 = pneg %p88
      %p177 = pneg %p117
      %p178 = pneg %p114
      %p179 = scmp.lt.s32.totalorder %s18, 1
      %s180 = scalar_select %p179, %s18, 1
      %s181 = scalar_lea.vmem %s3, %s180
      %s182 = smul.u32 8, %s19
      %p183 = scmp.lt.s32.totalorder %s18, 1
      %s184 = scalar_select %p183, %s18, 1
      %p185 = scmp.lt.s32.totalorder %s182, 7
      %s186 = scalar_select %p185, %s182, 7
      %s187 = smul.addr %s184, 8
      %s188 = sadd.s32 %s186, %s187
      %s189 = smul.addr %s188, 4
      %s190 = scalar_lea.vmem %s0, %s189
      %s191 = smul.u32 8, %s19
      %p192 = scmp.lt.s32.totalorder %s18, 1
      %s193 = scalar_select %p192, %s18, 1
      %s194 = scalar_lea.vmem %s3, %s193
      %p195 = scmp.eq.s32.totalorder %s19, 0
      // Predicated region
      $region33: #{diabetic_efficientnet_forward.9} parent=31 // pred_check
        %p196 = pneg %p195
      $region34: #{diabetic_efficientnet_forward.9} parent=31 // pred_check_branch
        %198 = sbr.rel (%p196) target = $region36
      $region35: #{diabetic_efficientnet_forward.9} parent=31 // pred_region
        %199 = vst [vmem:[#allocation2] sm:$0x1] 0.0
      $region36: #{diabetic_efficientnet_forward.9} parent=31 // pred_fallthru
        _
      %v200 = vld [vmem:[%s190] sm:$0xf]
      %v201 = vld [vmem:[%s190 + $0x4] sm:$0xf]
      %v202 = vld [vmem:[%s190 + $0x8] sm:$0xf]
      %v203 = vld [vmem:[%s190 + $0xc] sm:$0xf]
      %v204 = vld [vmem:[%s190 + $0x10] sm:$0xf]
      %v205 = vld [vmem:[%s190 + $0x14] sm:$0xf]
      %v206 = vld [vmem:[%s190 + $0x18] sm:$0xf]
      %v207 = vld [vmem:[%s190 + $0x1c] sm:$0xf]
      %v208 = vld [vmem:[%s1] sm:$0xf]
      %v209 = vld [vmem:[%s1 + $0x4] sm:$0xf]
      %v210 = vld [vmem:[%s1 + $0x8] sm:$0xf]
      %v211 = vld [vmem:[%s1 + $0xc] sm:$0xf]
      %v212 = vld [vmem:[%s1 + $0x10] sm:$0xf]
      %v213 = vld [vmem:[%s1 + $0x14] sm:$0xf]
      %v214 = vld [vmem:[%s1 + $0x18] sm:$0xf]
      %v215 = vld [vmem:[%s1 + $0x1c] sm:$0xf]
      %v216 = vld [vmem:[%s1 + $0x20] sm:$0xf]
      %v217 = vld [vmem:[%s1 + $0x24] sm:$0xf]
      %v218 = vld [vmem:[%s1 + $0x28] sm:$0xf]
      %v219 = vld [vmem:[%s1 + $0x2c] sm:$0xf]
      %v220 = vld [vmem:[%s1 + $0x30] sm:$0xf]
      %v221 = vld [vmem:[%s1 + $0x34] sm:$0xf]
      %v222 = vld [vmem:[%s1 + $0x38] sm:$0xf]
      %v223 = vld [vmem:[%s1 + $0x3c] sm:$0xf]
      %v224 = vld [vmem:[%s2] sm:$0x1]
      %v226 = vperm.slane %v224, 0
      %v236 = vunpack.c.l.b16 %v200
      %v237 = vunpack.c.l.b16 %v201
      %v238 = vunpack.c.l.b16 %v202
      %v239 = vunpack.c.l.b16 %v203
      %v240 = vunpack.c.l.b16 %v204
      %v241 = vunpack.c.l.b16 %v205
      %v242 = vunpack.c.l.b16 %v206
      %v243 = vunpack.c.l.b16 %v207
      %v244 = vpack.c.b16 %v237, %v236
      %v245 = vpack.c.b16 %v239, %v238
      %v246 = vpack.c.b16 %v241, %v240
      %v247 = vpack.c.b16 %v243, %v242
      %v268 = vunpack.c.l.b16 %v208
      %v269 = vunpack.c.l.b16 %v209
      %v270 = vunpack.c.l.b16 %v210
      %v271 = vunpack.c.l.b16 %v211
      %v272 = vunpack.c.l.b16 %v212
      %v273 = vunpack.c.l.b16 %v213
      %v274 = vunpack.c.l.b16 %v214
      %v275 = vunpack.c.l.b16 %v215
      %v276 = vunpack.c.l.b16 %v216
      %v277 = vunpack.c.l.b16 %v217
      %v278 = vunpack.c.l.b16 %v218
      %v279 = vunpack.c.l.b16 %v219
      %v280 = vunpack.c.l.b16 %v220
      %v281 = vunpack.c.l.b16 %v221
      %v282 = vunpack.c.l.b16 %v222
      %v283 = vunpack.c.l.b16 %v223
      %v284 = vpack.c.b16 %v269, %v268
      %v285 = vpack.c.b16 %v271, %v270
      %v286 = vpack.c.b16 %v273, %v272
      %v287 = vpack.c.b16 %v275, %v274
      %v288 = vpack.c.b16 %v277, %v276
      %v289 = vpack.c.b16 %v279, %v278
      %v290 = vpack.c.b16 %v281, %v280
      %v291 = vpack.c.b16 %v283, %v282
      %300 = vmatpush.bf16.msra.mxu0 %v291
      %301 = vmatpush.bf16.msra.mxu0 %v290
      %302 = vmatpush.bf16.msra.mxu0 %v289
      %303 = vmatpush.bf16.msra.mxu0 %v288
      %304 = vmatpush.bf16.msra.mxu0 %v287
      %305 = vmatpush.bf16.msra.mxu0 %v286
      %306 = vmatpush.bf16.msra.mxu0 %v285
      %307 = vmatpush.bf16.msra.mxu0 %v284
      %308 = vmatmul.bf16.gmra.mxu0 %v244
      %v309 = vpop.f32.mrf.mxu0
      %v310 = vadd.f32 %v226, %v309
      %v311 = vpop.f32.mrf.mxu0
      %v312 = vadd.f32 %v226, %v311
      %313 = vmatmul.bf16.gmra.mxu0 %v245
      %v314 = vpop.f32.mrf.mxu0
      %v315 = vadd.f32 %v226, %v314
      %v316 = vpop.f32.mrf.mxu0
      %v317 = vadd.f32 %v226, %v316
      %318 = vmatmul.bf16.gmra.mxu0 %v246
      %v319 = vpop.f32.mrf.mxu0
      %v320 = vadd.f32 %v226, %v319
      %v321 = vpop.f32.mrf.mxu0
      %v322 = vadd.f32 %v226, %v321
      %323 = vmatmul.bf16.gmra.mxu0 %v247
      %v324 = vpop.f32.mrf.mxu0
      %v325 = vadd.f32 %v226, %v324
      %v326 = vpop.f32.mrf.mxu0
      %v327 = vadd.f32 %v226, %v326
      %328 = vdwg.mxu0
      %v329 = vsub.f32 0.0, %v310
      %v330 = vsub.f32 0.0, %v312
      %v331 = vsub.f32 0.0, %v315
      %v332 = vsub.f32 0.0, %v317
      %v333 = vsub.f32 0.0, %v320
      %v334 = vsub.f32 0.0, %v322
      %v335 = vsub.f32 0.0, %v325
      %v336 = vsub.f32 0.0, %v327
      %v337 = vmul.f32 %v329, 1.442695
      %v338 = vpow.pop %v337
      %v339 = vmul.f32 %v330, 1.442695
      %v340 = vpow.pop %v339
      %v341 = vmul.f32 %v331, 1.442695
      %v342 = vpow.pop %v341
      %v343 = vmul.f32 %v332, 1.442695
      %v344 = vpow.pop %v343
      %v345 = vmul.f32 %v333, 1.442695
      %v346 = vpow.pop %v345
      %v347 = vmul.f32 %v334, 1.442695
      %v348 = vpow.pop %v347
      %v349 = vmul.f32 %v335, 1.442695
      %v350 = vpow.pop %v349
      %v351 = vmul.f32 %v336, 1.442695
      %v352 = vpow.pop %v351
      %v353 = vadd.f32 %v338, 1.0
      %v354 = vadd.f32 %v340, 1.0
      %v355 = vadd.f32 %v342, 1.0
      %v356 = vadd.f32 %v344, 1.0
      %v357 = vadd.f32 %v346, 1.0
      %v358 = vadd.f32 %v348, 1.0
      %v359 = vadd.f32 %v350, 1.0
      %v360 = vadd.f32 %v352, 1.0
      %v361 = vrcp.pop %v353
      %v362 = vrcp.pop %v354
      %v363 = vrcp.pop %v355
      %v364 = vrcp.pop %v356
      %v365 = vrcp.pop %v357
      %v366 = vrcp.pop %v358
      %v367 = vrcp.pop %v359
      %v368 = vrcp.pop %v360
      %v369 = vmul.f32 %v310, %v361
      %v370 = vmul.f32 %v312, %v362
      %v371 = vmul.f32 %v315, %v363
      %v372 = vmul.f32 %v317, %v364
      %v373 = vmul.f32 %v320, %v365
      %v374 = vmul.f32 %v322, %v366
      %v375 = vmul.f32 %v325, %v367
      %v376 = vmul.f32 %v327, %v368
      %v377 = vlaneseq
      %v378 = vshrl.u32 %v377, 7
      %v379 = vadd.s32 %v378, 8
      %v380 = vadd.s32 %v378, 16
      %v381 = vadd.s32 %v378, 24
      %v382 = vadd.s32 %v378, 32
      %v383 = vadd.s32 %v378, 40
      %v384 = vadd.s32 %v378, 48
      %v385 = vadd.s32 %v378, 56
      %s386 = smul.u32 %s19, 64
      %v387 = vstv %s386
      %v388 = vadd.s32 %v378, %v387
      %v389 = vadd.s32 %v379, %v387
      %v390 = vadd.s32 %v380, %v387
      %v391 = vadd.s32 %v381, %v387
      %v392 = vadd.s32 %v382, %v387
      %v393 = vadd.s32 %v383, %v387
      %v394 = vadd.s32 %v384, %v387
      %v395 = vadd.s32 %v385, %v387
      %vm396 = vcmp.lt.s32.totalorder %v388, 64
      %vm397 = vcmp.lt.s32.totalorder %v389, 64
      %vm398 = vcmp.lt.s32.totalorder %v390, 64
      %vm399 = vcmp.lt.s32.totalorder %v391, 64
      %vm400 = vcmp.lt.s32.totalorder %v392, 64
      %vm401 = vcmp.lt.s32.totalorder %v393, 64
      %vm402 = vcmp.lt.s32.totalorder %v394, 64
      %vm403 = vcmp.lt.s32.totalorder %v395, 64
      %v404 = vsel %vm396, %v369, 0.0
      %v405 = vsel %vm397, %v370, 0.0
      %v406 = vsel %vm398, %v371, 0.0
      %v407 = vsel %vm399, %v372, 0.0
      %v408 = vsel %vm400, %v373, 0.0
      %v409 = vsel %vm401, %v374, 0.0
      %v410 = vsel %vm402, %v375, 0.0
      %v411 = vsel %vm403, %v376, 0.0
      %v412 = vld [vmem:[#allocation2] sm:$0x1]
      %v413 = vadd.f32 %v404, %v405
      %v414 = vadd.f32 %v413, %v406
      %v415 = vadd.f32 %v414, %v407
      %v416 = vadd.f32 %v415, %v408
      %v417 = vadd.f32 %v416, %v409
      %v418 = vadd.f32 %v417, %v410
      %v419 = vadd.f32 %v418, %v411
      %v420 = vrot.slane %v419, 4
      %v421 = vadd.f32 %v419, %v420
      %v422 = vrot.slane %v421, 2
      %v423 = vadd.f32 %v421, %v422
      %v424 = vrot.slane %v423, 1
      %v425 = vadd.f32 %v423, %v424
      %v426 = vadd.f32 %v412, %v425
      %427 = vst [vmem:[#allocation2] sm:$0x1] %v426
      // Predicated region
      $region37: #{diabetic_efficientnet_forward.9} parent=31 // pred_check
        %p428 = pneg %p195
      $region38: #{diabetic_efficientnet_forward.9} parent=31 // pred_check_branch
        %430 = sbr.rel (%p428) target = $region40
      $region39: #{diabetic_efficientnet_forward.9} parent=31 // pred_region
        %v431 = vld [vmem:[#allocation2] sm:$0x1]
        %v432 = vmul.f32 %v431, 0.015625
        %433 = vst [vmem:[%s194] sm:$0x1] %v432
      $region40: #{diabetic_efficientnet_forward.9} parent=31 // pred_fallthru
        _
      %p434 = scmp.lt.s32.totalorder %s18, 1
      %s435 = scalar_select %p434, %s18, 1
      %s436 = scalar_lea.vmem %s3, %s435
      // Predicated region
      $region41: #{diabetic_efficientnet_forward.9} parent=31 // pred_check
        %p437 = pneg %p114
      $region42: #{diabetic_efficientnet_forward.9} parent=31 // pred_check_branch
        %439 = sbr.rel (%p437) target = $region44
      $region43: #{diabetic_efficientnet_forward.9} parent=31 // pred_region
        _
      $region44: #{diabetic_efficientnet_forward.9} parent=31 // pred_fallthru
        _
    $region32: #{diabetic_efficientnet_forward.9} parent=5 // pred_fallthru
      _
    %p440 = scmp.le.s32.totalorder 2, %s9
    // Predicated region
    $region45: #{diabetic_efficientnet_forward.9} parent=5 // pred_check
      %p441 = pneg %p440
    $region46: #{diabetic_efficientnet_forward.9} parent=5 // pred_check_branch
      %443 = sbr.rel (%p441) target = $region48
    $region47: #{diabetic_efficientnet_forward.9} parent=5 // pred_region
      %s444 = ssub.s32 %s9, 2
      // Predicated region
      $region49: #{diabetic_efficientnet_forward.9} parent=47 // pred_check
        %p445 = pneg %p120
      $region50: #{diabetic_efficientnet_forward.9} parent=47 // pred_check_branch
        %447 = sbr.rel (%p445) target = $region52
      $region51: #{diabetic_efficientnet_forward.9} parent=47 // pred_region
        %p448 = scmp.lt.s32.totalorder %s20, 1
        %s449 = scalar_select %p448, %s20, 1
        %s450 = scalar_lea.vmem %s3, %s449
      $region52: #{diabetic_efficientnet_forward.9} parent=47 // pred_fallthru
        _
    $region48: #{diabetic_efficientnet_forward.9} parent=5 // pred_fallthru
      _
  $region6: #{diabetic_efficientnet_forward.9} parent=0 // loop_footer
    %s13 = sadd.s32 1, %s9
  $region7: #{diabetic_efficientnet_forward.9} parent=0 // loop_footer_branch
    %8 = sbr.rel target = $region3
  $region8: #{diabetic_efficientnet_forward.9} parent=0 // loop_exit
    _

</llo_original>
